<compile_context>
chip_gen: v6e
topology: v6e:2x2x1
jax: 0.10.0
libtpu: 0.0.40
codegen_flags: <defaults>
</compile_context>

<pallas_src>
import functools

import jax
import jax.numpy as jnp
from jax.experimental import pallas as pl
from jax.experimental.pallas import tpu as pltpu

SEQ_LEN = 9          # hard-coded in the module: input.view(9, batch, input_size)
NUM_LAYERS = 2       # dropout=0.25 in nn.RNN only matters between layers (eval: identity)


def _pad8(n):
    return -(-n // 8) * 8


def _slab_layout(input_size, hidden_size):
    """Row offsets of each parameter inside the packed (rows, H) slab.

    Every entry starts on an 8-row (f32 sublane-tile) boundary so the static
    slices inside the kernel never straddle a sublane tile.
    """
    entries = (("w_ih0", input_size), ("w_hh0", hidden_size), ("b0", 1),
               ("w_ih1", hidden_size), ("w_hh1", hidden_size), ("b1", 1),
               ("w_out", hidden_size), ("b_out", 1))
    layout, off = {}, 0
    for name, rows in entries:
        layout[name] = (off, rows)
        off += _pad8(rows)
    return layout, off


def rnn_kernel(x_ref, h0_ref, slab_ref, out_ref, *,
               seq_len, batch, input_size, hidden_size):
    H, I = hidden_size, input_size
    layout, _ = _slab_layout(I, H)
    cd = slab_ref.dtype          # matmul-operand dtype (f32 or bf16)

    def param(name):
        off, rows = layout[name]
        return slab_ref[off:off + rows, :]     # static, 8-aligned slices

    w_ih0, w_hh0 = param("w_ih0"), param("w_hh0")      # (I, H), (H, H)
    w_ih1, w_hh1 = param("w_ih1"), param("w_hh1")      # (H, H), (H, H)
    w_out = param("w_out")                             # (H, O)  concat already folded
    b0 = param("b0").astype(jnp.float32)               # (1, H) == b_ih0 + b_hh0
    b1 = param("b1").astype(jnp.float32)               # (1, H) == b_ih1 + b_hh1
    b_out = param("b_out").astype(jnp.float32)         # (1, O)

    # ---- layer-0 input projection for ALL time steps as one matmul ----------
    # (off the serial critical path; overlaps with the recurrence below)
    x2d = x_ref[...].reshape(seq_len * batch, I).astype(cd)          # (S*B, I)
    gates0 = jnp.dot(x2d, w_ih0,
                     preferred_element_type=jnp.float32) + b0        # (S*B, H)

    h0 = h0_ref[0].astype(jnp.float32)                               # (B, H)
    h1 = h0_ref[1].astype(jnp.float32)                               # (B, H)

    # ---- interleaved two-layer recurrence (fully unrolled) -------------------
    # h1_t depends on h0_t, so the true chain is seq_len + 1 steps; layer-1 of
    # step t overlaps with layer-0 of step t+1.
    # nn.RNN dropout(0.25) between layers applies only in training -> identity.
    for t in range(seq_len):
        g0 = gates0[t * batch:(t + 1) * batch, :]                    # static slice
        h0 = jnp.tanh(g0 + jnp.dot(h0.astype(cd), w_hh0,
                                   preferred_element_type=jnp.float32))
        h1 = jnp.tanh(b1
                      + jnp.dot(h0.astype(cd), w_ih1,
                                preferred_element_type=jnp.float32)
                      + jnp.dot(h1.astype(cd), w_hh1,
                                preferred_element_type=jnp.float32))

    # oh2o(cat(hidden, output)) with output == hidden; concat folded into w_out.
    logits = jnp.dot(h1.astype(cd), w_out,
                     preferred_element_type=jnp.float32) + b_out
    # LogSoftmax(dim=1) in f32
    m = jnp.max(logits, axis=1, keepdims=True)
    lse = m + jnp.log(jnp.sum(jnp.exp(logits - m), axis=1, keepdims=True))
    out_ref[...] = (logits - lse).astype(out_ref.dtype)


def prepare_params(params, *, input_size, hidden_size, output_size,
                   compute_dtype=jnp.float32):
    """One-time parameter prep: transposes, bias fusion, concat fold, packing
    everything into a single (rows, H) slab (one DMA into VMEM per call)."""
    (w_ih0, w_hh0, b_ih0, b_hh0,
     w_ih1, w_hh1, b_ih1, b_hh1,
     w_out, b_out) = params
    # cat((hidden, output), 1) into Linear(hidden+output, output) only
    # type-checks when output_size == hidden_size — fail loudly otherwise.
    assert output_size == hidden_size, (
        "RNN module requires output_size == hidden_size "
        "(cat((hidden, output), 1) vs Linear(hidden+output, output))")
    # combined = concat([h, h]) -> fold duplicated halves of the weight.
    w_out_eff = (w_out[:, :hidden_size] + w_out[:, hidden_size:]).T   # (H, O)

    layout, total_rows = _slab_layout(input_size, hidden_size)
    slab = jnp.zeros((total_rows, hidden_size), jnp.float32)

    def put(s, name, value):
        off, rows = layout[name]
        return s.at[off:off + rows, :].set(value.reshape(rows, -1))

    slab = put(slab, "w_ih0", w_ih0.T)
    slab = put(slab, "w_hh0", w_hh0.T)
    slab = put(slab, "b0", b_ih0 + b_hh0)
    slab = put(slab, "w_ih1", w_ih1.T)
    slab = put(slab, "w_hh1", w_hh1.T)
    slab = put(slab, "b1", b_ih1 + b_hh1)
    slab = put(slab, "w_out", w_out_eff)
    slab = put(slab, "b_out", b_out)
    return slab.astype(compute_dtype)


def rnn_forward(x_flat, h0, param_slab, *, batch, input_size, hidden_size,
                output_size, batch_block=None):
    """Pallas equivalent of RNN.forward(input, hidden) (eval mode)."""
    if batch_block is None:
        batch_block = batch
    assert batch % batch_block == 0 and batch_block % 8 == 0, \
        "batch must split into sublane-aligned (multiple-of-8) blocks"
    # input.view(9, B, I): time-major, contiguous batch rows per time step.
    x3d = x_flat.reshape(SEQ_LEN, batch, input_size)

    kernel = functools.partial(
        rnn_kernel, seq_len=SEQ_LEN, batch=batch_block,
        input_size=input_size, hidden_size=hidden_size)

    grid = (batch // batch_block,)
    slab_rows = param_slab.shape[0]

    flops = (2 * SEQ_LEN * batch
             * (input_size * hidden_size + 3 * hidden_size * hidden_size)
             + 2 * batch * hidden_size * output_size)
    transcendentals = SEQ_LEN * batch * 2 * hidden_size + 2 * batch * output_size
    bytes_accessed = (x3d.size * x3d.dtype.itemsize
                      + h0.size * h0.dtype.itemsize
                      + grid[0] * param_slab.size * param_slab.dtype.itemsize
                      + batch * output_size * 4)

    return pl.pallas_call(
        kernel,
        out_shape=jax.ShapeDtypeStruct((batch, output_size), jnp.float32),
        grid=grid,
        in_specs=[
            # batch split across a "parallel" grid axis: independent sequences,
            # second TensorCore on v7x / megacore sharding when batched.
            pl.BlockSpec((SEQ_LEN, batch_block, input_size), lambda b: (0, b, 0)),
            pl.BlockSpec((NUM_LAYERS, batch_block, hidden_size), lambda b: (0, b, 0)),
            pl.BlockSpec((slab_rows, hidden_size), lambda b: (0, 0)),
        ],
        out_specs=pl.BlockSpec((batch_block, output_size), lambda b: (b, 0)),
        compiler_params=pltpu.CompilerParams(
            dimension_semantics=("parallel",)),
        cost_estimate=pl.CostEstimate(
            flops=flops, transcendentals=transcendentals,
            bytes_accessed=bytes_accessed),
    )(x3d, h0, param_slab)


def reference_forward(x_flat, h0, params, *, batch, input_size):
    """Pure-JAX f32 reference mirroring the PyTorch forward (eval mode)."""
    (w_ih0, w_hh0, b_ih0, b_hh0,
     w_ih1, w_hh1, b_ih1, b_hh1,
     w_out, b_out) = params
    x = x_flat.reshape(SEQ_LEN, batch, input_size)
    h0_s, h1_s = h0[0], h0[1]
    for t in range(SEQ_LEN):
        h0_s = jnp.tanh(x[t] @ w_ih0.T + b_ih0 + h0_s @ w_hh0.T + b_hh0)
        h1_s = jnp.tanh(h0_s @ w_ih1.T + b_ih1 + h1_s @ w_hh1.T + b_hh1)
    combined = jnp.concatenate([h1_s, h1_s], axis=1)
    logits = combined @ w_out.T + b_out
    return jax.nn.log_softmax(logits, axis=1)


if __name__ == "__main__":
    # Small shapes consistent with the module; batch=16 split into two blocks
    # of 8 so the grid axis actually exercises the parallel dimension.
    batch = 16
    batch_block = 8
    input_size = 16
    hidden_size = 32
    output_size = 32   # cat((hidden, output), 1) requires output_size == hidden_size

    key = jax.random.PRNGKey(0)
    ks = jax.random.split(key, 12)
    bound = 1.0 / jnp.sqrt(hidden_size)

    def u(k, shape):
        return jax.random.uniform(k, shape, jnp.float32, -bound, bound)

    params = (
        u(ks[0], (hidden_size, input_size)),                  # weight_ih_l0
        u(ks[1], (hidden_size, hidden_size)),                 # weight_hh_l0
        u(ks[2], (hidden_size,)),                             # bias_ih_l0
        u(ks[3], (hidden_size,)),                             # bias_hh_l0
        u(ks[4], (hidden_size, hidden_size)),                 # weight_ih_l1
        u(ks[5], (hidden_size, hidden_size)),                 # weight_hh_l1
        u(ks[6], (hidden_size,)),                             # bias_ih_l1
        u(ks[7], (hidden_size,)),                             # bias_hh_l1
        u(ks[8], (output_size, hidden_size + output_size)),   # oh2o.weight
        u(ks[9], (output_size,)),                             # oh2o.bias
    )

    # input (flat, reshaped by .view(9, B, I) inside forward) and initHidden()
    x_flat = jax.random.normal(ks[10], (SEQ_LEN * batch * input_size,), jnp.float32)
    h0 = jnp.zeros((NUM_LAYERS, batch, hidden_size), jnp.float32)

    ref = reference_forward(x_flat, h0, params, batch=batch, input_size=input_size)

    # --- f32 matmul operands: strict parity with the f32 reference -----------
    slab_f32 = prepare_params(params, input_size=input_size,
                              hidden_size=hidden_size, output_size=output_size,
                              compute_dtype=jnp.float32)
    out = rnn_forward(x_flat, h0, slab_f32, batch=batch, input_size=input_size,
                      hidden_size=hidden_size, output_size=output_size,
                      batch_block=batch_block)
    out = jax.block_until_ready(out)
    assert out.shape == (batch, output_size)
    assert jnp.allclose(out, ref, atol=1e-4, rtol=1e-4)

    # --- bf16 matmul operands (single-pass MXU), f32 accumulate/tanh/softmax --
    slab_bf16 = prepare_params(params, input_size=input_size,
                               hidden_size=hidden_size, output_size=output_size,
                               compute_dtype=jnp.bfloat16)
    out_bf16 = rnn_forward(x_flat, h0, slab_bf16, batch=batch,
                           input_size=input_size, hidden_size=hidden_size,
                           output_size=output_size, batch_block=batch_block)
    out_bf16 = jax.block_until_ready(out_bf16)
    assert jnp.allclose(out_bf16, ref, atol=1e-1, rtol=1e-1)

    print("KERNEL_OK")
</pallas_src>

<mosaic_0001>
module attributes {stable_mosaic.version = 11 : i64} {
  func.func @rnn_kernel(%arg0: i32, %arg1: memref<9x8x16xf32, #tpu.memory_space<vmem>>, %arg2: memref<2x8x32xf32, #tpu.memory_space<vmem>>, %arg3: memref<168x32xf32, #tpu.memory_space<vmem>>, %arg4: memref<8x32xf32, #tpu.memory_space<vmem>>) attributes {dimension_semantics = [#tpu.dimension_semantics<parallel>], iteration_bounds = array<i64: 2>, scalar_prefetch = 0 : i64, scratch_operands = 0 : i64, tpu.core_type = #tpu.core_type<tc>, window_params = [{transform_indices = @transform_0, window_bounds = array<i64: 9, 8, 16>}, {transform_indices = @transform_1, window_bounds = array<i64: 2, 8, 32>}, {pipeline_mode = #tpu.pipeline_mode<synchronous>, transform_indices = @transform_2, window_bounds = array<i64: 168, 32>}, {transform_indices = @transform_3, window_bounds = array<i64: 8, 32>}]} {
    %c0 = arith.constant 0 : index
    %c0_0 = arith.constant 0 : index
    %0 = vector.load %arg3[%c0, %c0_0] : memref<168x32xf32, #tpu.memory_space<vmem>>, vector<16x32xf32>
    %c16 = arith.constant 16 : index
    %c0_1 = arith.constant 0 : index
    %1 = vector.load %arg3[%c16, %c0_1] : memref<168x32xf32, #tpu.memory_space<vmem>>, vector<32x32xf32>
    %c56 = arith.constant 56 : index
    %c0_2 = arith.constant 0 : index
    %2 = vector.load %arg3[%c56, %c0_2] : memref<168x32xf32, #tpu.memory_space<vmem>>, vector<32x32xf32>
    %c88 = arith.constant 88 : index
    %c0_3 = arith.constant 0 : index
    %3 = vector.load %arg3[%c88, %c0_3] : memref<168x32xf32, #tpu.memory_space<vmem>>, vector<32x32xf32>
    %c128 = arith.constant 128 : index
    %c0_4 = arith.constant 0 : index
    %4 = vector.load %arg3[%c128, %c0_4] : memref<168x32xf32, #tpu.memory_space<vmem>>, vector<32x32xf32>
    %c48 = arith.constant 48 : index
    %c0_5 = arith.constant 0 : index
    %5 = vector.load %arg3[%c48, %c0_5] : memref<168x32xf32, #tpu.memory_space<vmem>>, vector<1x32xf32>
    %c120 = arith.constant 120 : index
    %c0_6 = arith.constant 0 : index
    %6 = vector.load %arg3[%c120, %c0_6] : memref<168x32xf32, #tpu.memory_space<vmem>>, vector<1x32xf32>
    %c160 = arith.constant 160 : index
    %c0_7 = arith.constant 0 : index
    %7 = vector.load %arg3[%c160, %c0_7] : memref<168x32xf32, #tpu.memory_space<vmem>>, vector<1x32xf32>
    %c0_8 = arith.constant 0 : index
    %c0_9 = arith.constant 0 : index
    %c0_10 = arith.constant 0 : index
    %8 = vector.load %arg1[%c0_8, %c0_9, %c0_10] : memref<9x8x16xf32, #tpu.memory_space<vmem>>, vector<9x8x16xf32>
    %9 = vector.shape_cast %8 : vector<9x8x16xf32> to vector<72x16xf32>
    %cst = arith.constant dense<0.000000e+00> : vector<72x32xf32>
    %10 = tpu.matmul %9, %0, %cst {dimension_numbers = #tpu.dot_dimension_numbers<[1], [0], [0], [1], [0, 0, 1, 1], [], []>} : vector<72x16xf32>, vector<16x32xf32>, vector<72x32xf32> -> vector<72x32xf32>
    %11 = vector.broadcast %5 : vector<1x32xf32> to vector<72x32xf32>
    %12 = arith.addf %10, %11 : vector<72x32xf32>
    %c0_11 = arith.constant 0 : index
    %c0_12 = arith.constant 0 : index
    %c0_13 = arith.constant 0 : index
    %13 = vector.load %arg2[%c0_11, %c0_12, %c0_13] : memref<2x8x32xf32, #tpu.memory_space<vmem>>, vector<1x8x32xf32>
    %14 = vector.shape_cast %13 : vector<1x8x32xf32> to vector<8x32xf32>
    %c1 = arith.constant 1 : index
    %c0_14 = arith.constant 0 : index
    %c0_15 = arith.constant 0 : index
    %15 = vector.load %arg2[%c1, %c0_14, %c0_15] : memref<2x8x32xf32, #tpu.memory_space<vmem>>, vector<1x8x32xf32>
    %16 = vector.shape_cast %15 : vector<1x8x32xf32> to vector<8x32xf32>
    %17 = vector.extract_strided_slice %12 {offsets = [0, 0], sizes = [8, 32], strides = [1, 1]} : vector<72x32xf32> to vector<8x32xf32>
    %cst_16 = arith.constant dense<0.000000e+00> : vector<8x32xf32>
    %18 = tpu.matmul %14, %1, %cst_16 {dimension_numbers = #tpu.dot_dimension_numbers<[1], [0], [0], [1], [0, 0, 1, 1], [], []>} : vector<8x32xf32>, vector<32x32xf32>, vector<8x32xf32> -> vector<8x32xf32>
    %19 = arith.addf %17, %18 : vector<8x32xf32>
    %20 = math.tanh %19 : vector<8x32xf32>
    %cst_17 = arith.constant dense<0.000000e+00> : vector<8x32xf32>
    %21 = tpu.matmul %20, %2, %cst_17 {dimension_numbers = #tpu.dot_dimension_numbers<[1], [0], [0], [1], [0, 0, 1, 1], [], []>} : vector<8x32xf32>, vector<32x32xf32>, vector<8x32xf32> -> vector<8x32xf32>
    %22 = vector.broadcast %6 : vector<1x32xf32> to vector<8x32xf32>
    %23 = arith.addf %22, %21 : vector<8x32xf32>
    %cst_18 = arith.constant dense<0.000000e+00> : vector<8x32xf32>
    %24 = tpu.matmul %16, %3, %cst_18 {dimension_numbers = #tpu.dot_dimension_numbers<[1], [0], [0], [1], [0, 0, 1, 1], [], []>} : vector<8x32xf32>, vector<32x32xf32>, vector<8x32xf32> -> vector<8x32xf32>
    %25 = arith.addf %23, %24 : vector<8x32xf32>
    %26 = math.tanh %25 : vector<8x32xf32>
    %27 = vector.extract_strided_slice %12 {offsets = [8, 0], sizes = [8, 32], strides = [1, 1]} : vector<72x32xf32> to vector<8x32xf32>
    %cst_19 = arith.constant dense<0.000000e+00> : vector<8x32xf32>
    %28 = tpu.matmul %20, %1, %cst_19 {dimension_numbers = #tpu.dot_dimension_numbers<[1], [0], [0], [1], [0, 0, 1, 1], [], []>} : vector<8x32xf32>, vector<32x32xf32>, vector<8x32xf32> -> vector<8x32xf32>
    %29 = arith.addf %27, %28 : vector<8x32xf32>
    %30 = math.tanh %29 : vector<8x32xf32>
    %cst_20 = arith.constant dense<0.000000e+00> : vector<8x32xf32>
    %31 = tpu.matmul %30, %2, %cst_20 {dimension_numbers = #tpu.dot_dimension_numbers<[1], [0], [0], [1], [0, 0, 1, 1], [], []>} : vector<8x32xf32>, vector<32x32xf32>, vector<8x32xf32> -> vector<8x32xf32>
    %32 = vector.broadcast %6 : vector<1x32xf32> to vector<8x32xf32>
    %33 = arith.addf %32, %31 : vector<8x32xf32>
    %cst_21 = arith.constant dense<0.000000e+00> : vector<8x32xf32>
    %34 = tpu.matmul %26, %3, %cst_21 {dimension_numbers = #tpu.dot_dimension_numbers<[1], [0], [0], [1], [0, 0, 1, 1], [], []>} : vector<8x32xf32>, vector<32x32xf32>, vector<8x32xf32> -> vector<8x32xf32>
    %35 = arith.addf %33, %34 : vector<8x32xf32>
    %36 = math.tanh %35 : vector<8x32xf32>
    %37 = vector.extract_strided_slice %12 {offsets = [16, 0], sizes = [8, 32], strides = [1, 1]} : vector<72x32xf32> to vector<8x32xf32>
    %cst_22 = arith.constant dense<0.000000e+00> : vector<8x32xf32>
    %38 = tpu.matmul %30, %1, %cst_22 {dimension_numbers = #tpu.dot_dimension_numbers<[1], [0], [0], [1], [0, 0, 1, 1], [], []>} : vector<8x32xf32>, vector<32x32xf32>, vector<8x32xf32> -> vector<8x32xf32>
    %39 = arith.addf %37, %38 : vector<8x32xf32>
    %40 = math.tanh %39 : vector<8x32xf32>
    %cst_23 = arith.constant dense<0.000000e+00> : vector<8x32xf32>
    %41 = tpu.matmul %40, %2, %cst_23 {dimension_numbers = #tpu.dot_dimension_numbers<[1], [0], [0], [1], [0, 0, 1, 1], [], []>} : vector<8x32xf32>, vector<32x32xf32>, vector<8x32xf32> -> vector<8x32xf32>
    %42 = vector.broadcast %6 : vector<1x32xf32> to vector<8x32xf32>
    %43 = arith.addf %42, %41 : vector<8x32xf32>
    %cst_24 = arith.constant dense<0.000000e+00> : vector<8x32xf32>
    %44 = tpu.matmul %36, %3, %cst_24 {dimension_numbers = #tpu.dot_dimension_numbers<[1], [0], [0], [1], [0, 0, 1, 1], [], []>} : vector<8x32xf32>, vector<32x32xf32>, vector<8x32xf32> -> vector<8x32xf32>
    %45 = arith.addf %43, %44 : vector<8x32xf32>
    %46 = math.tanh %45 : vector<8x32xf32>
    %47 = vector.extract_strided_slice %12 {offsets = [24, 0], sizes = [8, 32], strides = [1, 1]} : vector<72x32xf32> to vector<8x32xf32>
    %cst_25 = arith.constant dense<0.000000e+00> : vector<8x32xf32>
    %48 = tpu.matmul %40, %1, %cst_25 {dimension_numbers = #tpu.dot_dimension_numbers<[1], [0], [0], [1], [0, 0, 1, 1], [], []>} : vector<8x32xf32>, vector<32x32xf32>, vector<8x32xf32> -> vector<8x32xf32>
    %49 = arith.addf %47, %48 : vector<8x32xf32>
    %50 = math.tanh %49 : vector<8x32xf32>
    %cst_26 = arith.constant dense<0.000000e+00> : vector<8x32xf32>
    %51 = tpu.matmul %50, %2, %cst_26 {dimension_numbers = #tpu.dot_dimension_numbers<[1], [0], [0], [1], [0, 0, 1, 1], [], []>} : vector<8x32xf32>, vector<32x32xf32>, vector<8x32xf32> -> vector<8x32xf32>
    %52 = vector.broadcast %6 : vector<1x32xf32> to vector<8x32xf32>
    %53 = arith.addf %52, %51 : vector<8x32xf32>
    %cst_27 = arith.constant dense<0.000000e+00> : vector<8x32xf32>
    %54 = tpu.matmul %46, %3, %cst_27 {dimension_numbers = #tpu.dot_dimension_numbers<[1], [0], [0], [1], [0, 0, 1, 1], [], []>} : vector<8x32xf32>, vector<32x32xf32>, vector<8x32xf32> -> vector<8x32xf32>
    %55 = arith.addf %53, %54 : vector<8x32xf32>
    %56 = math.tanh %55 : vector<8x32xf32>
    %57 = vector.extract_strided_slice %12 {offsets = [32, 0], sizes = [8, 32], strides = [1, 1]} : vector<72x32xf32> to vector<8x32xf32>
    %cst_28 = arith.constant dense<0.000000e+00> : vector<8x32xf32>
    %58 = tpu.matmul %50, %1, %cst_28 {dimension_numbers = #tpu.dot_dimension_numbers<[1], [0], [0], [1], [0, 0, 1, 1], [], []>} : vector<8x32xf32>, vector<32x32xf32>, vector<8x32xf32> -> vector<8x32xf32>
    %59 = arith.addf %57, %58 : vector<8x32xf32>
    %60 = math.tanh %59 : vector<8x32xf32>
    %cst_29 = arith.constant dense<0.000000e+00> : vector<8x32xf32>
    %61 = tpu.matmul %60, %2, %cst_29 {dimension_numbers = #tpu.dot_dimension_numbers<[1], [0], [0], [1], [0, 0, 1, 1], [], []>} : vector<8x32xf32>, vector<32x32xf32>, vector<8x32xf32> -> vector<8x32xf32>
    %62 = vector.broadcast %6 : vector<1x32xf32> to vector<8x32xf32>
    %63 = arith.addf %62, %61 : vector<8x32xf32>
    %cst_30 = arith.constant dense<0.000000e+00> : vector<8x32xf32>
    %64 = tpu.matmul %56, %3, %cst_30 {dimension_numbers = #tpu.dot_dimension_numbers<[1], [0], [0], [1], [0, 0, 1, 1], [], []>} : vector<8x32xf32>, vector<32x32xf32>, vector<8x32xf32> -> vector<8x32xf32>
    %65 = arith.addf %63, %64 : vector<8x32xf32>
    %66 = math.tanh %65 : vector<8x32xf32>
    %67 = vector.extract_strided_slice %12 {offsets = [40, 0], sizes = [8, 32], strides = [1, 1]} : vector<72x32xf32> to vector<8x32xf32>
    %cst_31 = arith.constant dense<0.000000e+00> : vector<8x32xf32>
    %68 = tpu.matmul %60, %1, %cst_31 {dimension_numbers = #tpu.dot_dimension_numbers<[1], [0], [0], [1], [0, 0, 1, 1], [], []>} : vector<8x32xf32>, vector<32x32xf32>, vector<8x32xf32> -> vector<8x32xf32>
    %69 = arith.addf %67, %68 : vector<8x32xf32>
    %70 = math.tanh %69 : vector<8x32xf32>
    %cst_32 = arith.constant dense<0.000000e+00> : vector<8x32xf32>
    %71 = tpu.matmul %70, %2, %cst_32 {dimension_numbers = #tpu.dot_dimension_numbers<[1], [0], [0], [1], [0, 0, 1, 1], [], []>} : vector<8x32xf32>, vector<32x32xf32>, vector<8x32xf32> -> vector<8x32xf32>
    %72 = vector.broadcast %6 : vector<1x32xf32> to vector<8x32xf32>
    %73 = arith.addf %72, %71 : vector<8x32xf32>
    %cst_33 = arith.constant dense<0.000000e+00> : vector<8x32xf32>
    %74 = tpu.matmul %66, %3, %cst_33 {dimension_numbers = #tpu.dot_dimension_numbers<[1], [0], [0], [1], [0, 0, 1, 1], [], []>} : vector<8x32xf32>, vector<32x32xf32>, vector<8x32xf32> -> vector<8x32xf32>
    %75 = arith.addf %73, %74 : vector<8x32xf32>
    %76 = math.tanh %75 : vector<8x32xf32>
    %77 = vector.extract_strided_slice %12 {offsets = [48, 0], sizes = [8, 32], strides = [1, 1]} : vector<72x32xf32> to vector<8x32xf32>
    %cst_34 = arith.constant dense<0.000000e+00> : vector<8x32xf32>
    %78 = tpu.matmul %70, %1, %cst_34 {dimension_numbers = #tpu.dot_dimension_numbers<[1], [0], [0], [1], [0, 0, 1, 1], [], []>} : vector<8x32xf32>, vector<32x32xf32>, vector<8x32xf32> -> vector<8x32xf32>
    %79 = arith.addf %77, %78 : vector<8x32xf32>
    %80 = math.tanh %79 : vector<8x32xf32>
    %cst_35 = arith.constant dense<0.000000e+00> : vector<8x32xf32>
    %81 = tpu.matmul %80, %2, %cst_35 {dimension_numbers = #tpu.dot_dimension_numbers<[1], [0], [0], [1], [0, 0, 1, 1], [], []>} : vector<8x32xf32>, vector<32x32xf32>, vector<8x32xf32> -> vector<8x32xf32>
    %82 = vector.broadcast %6 : vector<1x32xf32> to vector<8x32xf32>
    %83 = arith.addf %82, %81 : vector<8x32xf32>
    %cst_36 = arith.constant dense<0.000000e+00> : vector<8x32xf32>
    %84 = tpu.matmul %76, %3, %cst_36 {dimension_numbers = #tpu.dot_dimension_numbers<[1], [0], [0], [1], [0, 0, 1, 1], [], []>} : vector<8x32xf32>, vector<32x32xf32>, vector<8x32xf32> -> vector<8x32xf32>
    %85 = arith.addf %83, %84 : vector<8x32xf32>
    %86 = math.tanh %85 : vector<8x32xf32>
    %87 = vector.extract_strided_slice %12 {offsets = [56, 0], sizes = [8, 32], strides = [1, 1]} : vector<72x32xf32> to vector<8x32xf32>
    %cst_37 = arith.constant dense<0.000000e+00> : vector<8x32xf32>
    %88 = tpu.matmul %80, %1, %cst_37 {dimension_numbers = #tpu.dot_dimension_numbers<[1], [0], [0], [1], [0, 0, 1, 1], [], []>} : vector<8x32xf32>, vector<32x32xf32>, vector<8x32xf32> -> vector<8x32xf32>
    %89 = arith.addf %87, %88 : vector<8x32xf32>
    %90 = math.tanh %89 : vector<8x32xf32>
    %cst_38 = arith.constant dense<0.000000e+00> : vector<8x32xf32>
    %91 = tpu.matmul %90, %2, %cst_38 {dimension_numbers = #tpu.dot_dimension_numbers<[1], [0], [0], [1], [0, 0, 1, 1], [], []>} : vector<8x32xf32>, vector<32x32xf32>, vector<8x32xf32> -> vector<8x32xf32>
    %92 = vector.broadcast %6 : vector<1x32xf32> to vector<8x32xf32>
    %93 = arith.addf %92, %91 : vector<8x32xf32>
    %cst_39 = arith.constant dense<0.000000e+00> : vector<8x32xf32>
    %94 = tpu.matmul %86, %3, %cst_39 {dimension_numbers = #tpu.dot_dimension_numbers<[1], [0], [0], [1], [0, 0, 1, 1], [], []>} : vector<8x32xf32>, vector<32x32xf32>, vector<8x32xf32> -> vector<8x32xf32>
    %95 = arith.addf %93, %94 : vector<8x32xf32>
    %96 = math.tanh %95 : vector<8x32xf32>
    %97 = vector.extract_strided_slice %12 {offsets = [64, 0], sizes = [8, 32], strides = [1, 1]} : vector<72x32xf32> to vector<8x32xf32>
    %cst_40 = arith.constant dense<0.000000e+00> : vector<8x32xf32>
    %98 = tpu.matmul %90, %1, %cst_40 {dimension_numbers = #tpu.dot_dimension_numbers<[1], [0], [0], [1], [0, 0, 1, 1], [], []>} : vector<8x32xf32>, vector<32x32xf32>, vector<8x32xf32> -> vector<8x32xf32>
    %99 = arith.addf %97, %98 : vector<8x32xf32>
    %100 = math.tanh %99 : vector<8x32xf32>
    %cst_41 = arith.constant dense<0.000000e+00> : vector<8x32xf32>
    %101 = tpu.matmul %100, %2, %cst_41 {dimension_numbers = #tpu.dot_dimension_numbers<[1], [0], [0], [1], [0, 0, 1, 1], [], []>} : vector<8x32xf32>, vector<32x32xf32>, vector<8x32xf32> -> vector<8x32xf32>
    %102 = vector.broadcast %6 : vector<1x32xf32> to vector<8x32xf32>
    %103 = arith.addf %102, %101 : vector<8x32xf32>
    %cst_42 = arith.constant dense<0.000000e+00> : vector<8x32xf32>
    %104 = tpu.matmul %96, %3, %cst_42 {dimension_numbers = #tpu.dot_dimension_numbers<[1], [0], [0], [1], [0, 0, 1, 1], [], []>} : vector<8x32xf32>, vector<32x32xf32>, vector<8x32xf32> -> vector<8x32xf32>
    %105 = arith.addf %103, %104 : vector<8x32xf32>
    %106 = math.tanh %105 : vector<8x32xf32>
    %cst_43 = arith.constant dense<0.000000e+00> : vector<8x32xf32>
    %107 = tpu.matmul %106, %4, %cst_43 {dimension_numbers = #tpu.dot_dimension_numbers<[1], [0], [0], [1], [0, 0, 1, 1], [], []>} : vector<8x32xf32>, vector<32x32xf32>, vector<8x32xf32> -> vector<8x32xf32>
    %108 = vector.broadcast %7 : vector<1x32xf32> to vector<8x32xf32>
    %109 = arith.addf %107, %108 : vector<8x32xf32>
    %cst_44 = arith.constant dense<0xFF800000> : vector<8xf32>
    %110 = vector.multi_reduction <maximumf>, %109, %cst_44 [1] : vector<8x32xf32> to vector<8xf32>
    %111 = vector.shape_cast %110 : vector<8xf32> to vector<8x1xf32>
    %112 = vector.broadcast %111 : vector<8x1xf32> to vector<8x32xf32>
    %113 = arith.subf %109, %112 : vector<8x32xf32>
    %114 = math.exp %113 : vector<8x32xf32>
    %cst_45 = arith.constant dense<0.000000e+00> : vector<8xf32>
    %115 = vector.multi_reduction <add>, %114, %cst_45 [1] : vector<8x32xf32> to vector<8xf32>
    %116 = vector.shape_cast %115 : vector<8xf32> to vector<8x1xf32>
    %117 = math.log %116 : vector<8x1xf32>
    %118 = arith.addf %111, %117 : vector<8x1xf32>
    %119 = vector.broadcast %118 : vector<8x1xf32> to vector<8x32xf32>
    %120 = arith.subf %109, %119 : vector<8x32xf32>
    %c0_46 = arith.constant 0 : index
    %c0_47 = arith.constant 0 : index
    %121 = vector.load %arg4[%c0_46, %c0_47] : memref<8x32xf32, #tpu.memory_space<vmem>>, vector<8x32xf32>
    tpu.vector_store %arg4[%c0_46, %c0_47], %120 {strides = array<i32>} : memref<8x32xf32, #tpu.memory_space<vmem>>, vector<8x32xf32>,
    return
  }
  func.func @transform_0(%arg0: i32) -> (i32, i32, i32) {
    %c0_i32 = arith.constant 0 : i32
    %c0_i32_0 = arith.constant 0 : i32
    %c0_i32_1 = arith.constant 0 : i32
    return %c0_i32, %arg0, %c0_i32_0 : i32, i32, i32
  }
  func.func @transform_1(%arg0: i32) -> (i32, i32, i32) {
    %c0_i32 = arith.constant 0 : i32
    %c0_i32_0 = arith.constant 0 : i32
    %c0_i32_1 = arith.constant 0 : i32
    return %c0_i32, %arg0, %c0_i32_0 : i32, i32, i32
  }
  func.func @transform_2(%arg0: i32) -> (i32, i32) {
    %c0_i32 = arith.constant 0 : i32
    %c0_i32_0 = arith.constant 0 : i32
    %c0_i32_1 = arith.constant 0 : i32
    return %c0_i32, %c0_i32_0 : i32, i32
  }
  func.func @transform_3(%arg0: i32) -> (i32, i32) {
    %c0_i32 = arith.constant 0 : i32
    %c0_i32_0 = arith.constant 0 : i32
    return %arg0, %c0_i32 : i32, i32
  }
}

</mosaic_0001>

<llo_original>
// kernel: tpu_custom_call.1
$region0: #{tpu_custom_call.1}
  #allocation0 [shape = 'u32[]', space=smem, size = 0x4, offset = 0x4, fixed_abs, tag = 'smem constant byte address 0x4 - core index']
  #allocation1 [shape = 'u32[144,128]{1,0:T(1,128)}', space=vmem, size = 0x12000, scoped, tag = 'internal scratch']
  %s0 = inlined_call_operand.vmem [shape: f32[9,16,16], index: 0, kind: input, shape index: {}]
  %s1 = inlined_call_operand.vmem [shape: f32[2,16,32], index: 1, kind: input, shape index: {}]
  %s2 = inlined_call_operand.vmem [shape: f32[168,32], index: 2, kind: input, shape index: {}]
  %s3 = inlined_call_operand.hbm [shape: f32[16,32], index: 3, kind: output, shape index: {}]
  %s4 = sld [smem:[#allocation0]]
  $region121: #{tpu_custom_call.1} parent=0
    _
  %s6 = ssub.s32 1, %s4
  %s7 = scalar_select 0, %s6, %s4
  $region1: #{tpu_custom_call.1} parent=0
    #allocation2 [shape = 'u8[73728]{0}', space=vmem, size = 0x12000, scoped, tag = 'input window, operand 0']
    #allocation3 [shape = 'u8[16384]{0}', space=vmem, size = 0x4000, scoped, tag = 'input window, operand 1']
    #allocation4 [shape = 'u8[8192]{0}', space=vmem, size = 0x2000, scoped, tag = 'output window, operand 0']
    #allocation5 [shape = 's32[2]{0}', space=sflag, size = 0x8, scoped, tag = 'scoped memory for tpu_custom_call.1']
    %8 = vsyncpa [#allocation5], 0
    %s9 = scalar_lea.sflag [#allocation5], 1
    %10 = vsyncpa %s9, 0
    loop: start=0, step=1, limit=4
    $region2: #{tpu_custom_call.1} parent=1 // loop_pre_header
      _
    $region3: #{tpu_custom_call.1} parent=1 // loop_header
      %s12 = sphi 0, %s16
      %p13 = scmp.ge.s32.totalorder %s12, 4
      %s22 = sphi 0, %s24
      %s25 = sphi 0, %s22
      %s26 = sphi 0, %s25
      %s42 = sphi 0, %s26
      %s48 = sphi 0, %s50
      %s51 = sphi 0, %s48
      %s52 = sphi 0, %s51
      %s68 = sphi 0, %s52
      %s72 = sphi 0, %s72
      %s74 = sphi 0, %s72
      %s75 = sphi 0, %s74
      %s89 = sphi 0, %s75
      %s95 = sphi 0, %s97
      %s98 = sphi 0, %s95
      %s99 = sphi 0, %s98
      %s115 = sphi 0, %s99
    $region4: #{tpu_custom_call.1} parent=1 // loop_header_branch
      %15 = sbr.rel (%p13) target = $region8
    $region5: #{tpu_custom_call.1} parent=1 // loop_body
      %s17 = ssub.s32 %s12, 1
      %s18 = ssub.s32 %s12, 2
      %s19 = sadd.s32 %s12, 1
      %s20 = ssub.s32 %s12, %s19
      %p21 = scmp.eq.s32.totalorder %s20, 0
      %s23 = sadd.s32 %s22, 1
      %s24 = scalar_select %p21, %s22, %s23
      %p27 = pneg %p21
      %p28 = scmp.eq.s32.totalorder %s12, 1
      %p29 = por %p27, %p28
      %p30 = scmp.ne.s32.totalorder %s22, %s25
      %p31 = scmp.eq.s32.totalorder %s12, 0
      %p32 = por %p30, %p31
      %p33 = scmp.ne.s32.totalorder %s22, %s25
      %p34 = scmp.eq.s32.totalorder %s17, 1
      %p35 = por %p33, %p34
      %p36 = scmp.ne.s32.totalorder %s25, %s26
      %p37 = scmp.eq.s32.totalorder %s17, 0
      %p38 = por %p36, %p37
      %p39 = scmp.ne.s32.totalorder %s25, %s26
      %p40 = scmp.eq.s32.totalorder %s18, 1
      %p41 = por %p39, %p40
      %p43 = scmp.ne.s32.totalorder %s26, %s42
      %p44 = scmp.eq.s32.totalorder %s18, 0
      %p45 = por %p43, %p44
      %s46 = ssub.s32 %s12, %s19
      %p47 = scmp.eq.s32.totalorder %s46, 0
      %s49 = sadd.s32 %s48, 1
      %s50 = scalar_select %p47, %s48, %s49
      %p53 = pneg %p47
      %p54 = scmp.eq.s32.totalorder %s12, 1
      %p55 = por %p53, %p54
      %p56 = scmp.ne.s32.totalorder %s48, %s51
      %p57 = scmp.eq.s32.totalorder %s12, 0
      %p58 = por %p56, %p57
      %p59 = scmp.ne.s32.totalorder %s48, %s51
      %p60 = scmp.eq.s32.totalorder %s17, 1
      %p61 = por %p59, %p60
      %p62 = scmp.ne.s32.totalorder %s51, %s52
      %p63 = scmp.eq.s32.totalorder %s17, 0
      %p64 = por %p62, %p63
      %p65 = scmp.ne.s32.totalorder %s51, %s52
      %p66 = scmp.eq.s32.totalorder %s18, 1
      %p67 = por %p65, %p66
      %p69 = scmp.ne.s32.totalorder %s52, %s68
      %p70 = scmp.eq.s32.totalorder %s18, 0
      %p71 = por %p69, %p70
      %s73 = sadd.s32 %s72, 1
      %p76 = scmp.eq.s32.totalorder %s12, 1
      %p77 = scmp.ne.s32.totalorder %s72, %s74
      %p78 = scmp.eq.s32.totalorder %s12, 0
      %p79 = por %p77, %p78
      %p80 = scmp.ne.s32.totalorder %s72, %s74
      %p81 = scmp.eq.s32.totalorder %s17, 1
      %p82 = por %p80, %p81
      %p83 = scmp.ne.s32.totalorder %s74, %s75
      %p84 = scmp.eq.s32.totalorder %s17, 0
      %p85 = por %p83, %p84
      %p86 = scmp.ne.s32.totalorder %s74, %s75
      %p87 = scmp.eq.s32.totalorder %s18, 1
      %p88 = por %p86, %p87
      %p90 = scmp.ne.s32.totalorder %s75, %s89
      %p91 = scmp.eq.s32.totalorder %s18, 0
      %p92 = por %p90, %p91
      %s93 = ssub.s32 %s12, %s19
      %p94 = scmp.eq.s32.totalorder %s93, 0
      %s96 = sadd.s32 %s95, 1
      %s97 = scalar_select %p94, %s95, %s96
      %p100 = pneg %p94
      %p101 = scmp.eq.s32.totalorder %s12, 1
      %p102 = por %p100, %p101
      %p103 = scmp.ne.s32.totalorder %s95, %s98
      %p104 = scmp.eq.s32.totalorder %s12, 0
      %p105 = por %p103, %p104
      %p106 = scmp.ne.s32.totalorder %s95, %s98
      %p107 = scmp.eq.s32.totalorder %s17, 1
      %p108 = por %p106, %p107
      %p109 = scmp.ne.s32.totalorder %s98, %s99
      %p110 = scmp.eq.s32.totalorder %s17, 0
      %p111 = por %p109, %p110
      %p112 = scmp.ne.s32.totalorder %s98, %s99
      %p113 = scmp.eq.s32.totalorder %s18, 1
      %p114 = por %p112, %p113
      %p116 = scmp.ne.s32.totalorder %s99, %s115
      %p117 = scmp.eq.s32.totalorder %s18, 0
      %p118 = por %p116, %p117
      %p119 = scmp.le.s32.totalorder 1, %s12
      %p120 = scmp.lt.s32.totalorder %s12, 3
      %p121 = pnand %p119, %p120
      %p122 = pneg %p121
      // Predicated region
      $region9: #{tpu_custom_call.1} parent=5 // pred_check
        _
      $region10: #{tpu_custom_call.1} parent=5 // pred_check_branch
        %124 = sbr.rel (%p121) target = $region12
      $region11: #{tpu_custom_call.1} parent=5 // pred_region
        %s125 = ssub.s32 %s12, 1
        // Predicated region
        $region13: #{tpu_custom_call.1} parent=11 // pred_check
          %p126 = pneg %p85
        $region14: #{tpu_custom_call.1} parent=11 // pred_check_branch
          %128 = sbr.rel (%p126) target = $region16
        $region15: #{tpu_custom_call.1} parent=11 // pred_region
          _
        $region16: #{tpu_custom_call.1} parent=11 // pred_fallthru
          _
      $region12: #{tpu_custom_call.1} parent=5 // pred_fallthru
        _
      %p129 = scmp.lt.s32.totalorder %s12, 2
      // Predicated region
      $region17: #{tpu_custom_call.1} parent=5 // pred_check
        %p130 = pneg %p129
      $region18: #{tpu_custom_call.1} parent=5 // pred_check_branch
        %132 = sbr.rel (%p130) target = $region20
      $region19: #{tpu_custom_call.1} parent=5 // pred_region
        // Predicated region
        $region21: #{tpu_custom_call.1} parent=19 // pred_check
          %p133 = pneg %p32
        $region22: #{tpu_custom_call.1} parent=19 // pred_check_branch
          %135 = sbr.rel (%p133) target = $region24
        $region23: #{tpu_custom_call.1} parent=19 // pred_region
          %s136 = sand.u32 %s22, 1
          %s137 = sand.u32 %s22, 1
          %s138 = smul.addr %s137, 72
          %s139 = scalar_lea.vmem [#allocation2], %s138
          %s140 = smul.addr %s12, 8
          %s141 = scalar_lea.vmem %s0, %s140
          // Predicated region
          $region25: #{tpu_custom_call.1} parent=23 // pred_check
            _
          $region26: #{tpu_custom_call.1} parent=23 // pred_check_branch
            %143 = sbr.rel (0) target = $region28
          $region27: #{tpu_custom_call.1} parent=23 // pred_region
            // Predicated region
            $region29: #{tpu_custom_call.1} parent=27 // pred_check
              _
            $region30: #{tpu_custom_call.1} parent=27 // pred_check_branch
              %145 = sbr.rel (0) target = $region32
            $region31: #{tpu_custom_call.1} parent=27 // pred_region
              // Predicated region
              $region44: #{tpu_custom_call.1} parent=31 // pred_check
                _
              $region45: #{tpu_custom_call.1} parent=31 // pred_check_branch
                %177 = sbr.rel (0) target = $region47
              $region46: #{tpu_custom_call.1} parent=31 // pred_region
                loop: start=0, step=1, limit=1
                $region48: #{tpu_custom_call.1} parent=46 // loop_pre_header
                  _
                $region49: #{tpu_custom_call.1} parent=46 // loop_header
                  %s179 = sphi 0, %s183
                  %p180 = scmp.ge.s32.totalorder %s179, 1
                  %s184 = sphi %s141, %s141
                  %s185 = sphi %s139, %s139
                $region50: #{tpu_custom_call.1} parent=46 // loop_header_branch
                  %182 = sbr.rel (%p180) target = $region54
                $region51: #{tpu_custom_call.1} parent=46 // loop_body
                  %v186 = vld [vmem:[%s184] sm:$0xff]
                  %187 = vst [vmem:[%s185] sm:$0xff] %v186
                  %v188 = vld [vmem:[%s184 + $0x10] sm:$0xff]
                  %189 = vst [vmem:[%s185 + $0x8] sm:$0xff] %v188
                  %v190 = vld [vmem:[%s184 + $0x20] sm:$0xff]
                  %191 = vst [vmem:[%s185 + $0x10] sm:$0xff] %v190
                  %v192 = vld [vmem:[%s184 + $0x30] sm:$0xff]
                  %193 = vst [vmem:[%s185 + $0x18] sm:$0xff] %v192
                  %v194 = vld [vmem:[%s184 + $0x40] sm:$0xff]
                  %195 = vst [vmem:[%s185 + $0x20] sm:$0xff] %v194
                  %v196 = vld [vmem:[%s184 + $0x50] sm:$0xff]
                  %197 = vst [vmem:[%s185 + $0x28] sm:$0xff] %v196
                  %v198 = vld [vmem:[%s184 + $0x60] sm:$0xff]
                  %199 = vst [vmem:[%s185 + $0x30] sm:$0xff] %v198
                  %v200 = vld [vmem:[%s184 + $0x70] sm:$0xff]
                  %201 = vst [vmem:[%s185 + $0x38] sm:$0xff] %v200
                  %v202 = vld [vmem:[%s184 + $0x80] sm:$0xff]
                  %203 = vst [vmem:[%s185 + $0x40] sm:$0xff] %v202
                $region52: #{tpu_custom_call.1} parent=46 // loop_footer
                  %s183 = sadd.s32 1, %s179
                $region53: #{tpu_custom_call.1} parent=46 // loop_footer_branch
                  %178 = sbr.rel target = $region49
                $region54: #{tpu_custom_call.1} parent=46 // loop_exit
                  _
              $region47: #{tpu_custom_call.1} parent=31 // pred_fallthru
                _
              // Predicated region
              $region55: #{tpu_custom_call.1} parent=31 // pred_check
                _
              $region56: #{tpu_custom_call.1} parent=31 // pred_check_branch
                %205 = sbr.rel target = $region58
              $region57: #{tpu_custom_call.1} parent=31 // pred_region
                _
              $region58: #{tpu_custom_call.1} parent=31 // pred_fallthru
                _
            $region32: #{tpu_custom_call.1} parent=27 // pred_fallthru
              _
            // Predicated region
            $region33: #{tpu_custom_call.1} parent=27 // pred_check
              _
            $region34: #{tpu_custom_call.1} parent=27 // pred_check_branch
              %147 = sbr.rel target = $region36
            $region35: #{tpu_custom_call.1} parent=27 // pred_region
              %s149 = ssub.s32 256, 1
              loop: start=0, step=1, limit=1
              $region37: #{tpu_custom_call.1} parent=35 // loop_pre_header
                _
              $region38: #{tpu_custom_call.1} parent=35 // loop_header
                %s151 = sphi 0, %s155
                %p152 = scmp.ge.s32.totalorder %s151, 1
                %s156 = sphi %s141, %s141
                %s157 = sphi %s139, %s139
              $region39: #{tpu_custom_call.1} parent=35 // loop_header_branch
                %154 = sbr.rel (%p152) target = $region43
              $region40: #{tpu_custom_call.1} parent=35 // loop_body
                %v158 = vld [vmem:[%s156] sm:%s149]
                %159 = vst [vmem:[%s157] sm:%s149] %v158
                %v160 = vld [vmem:[%s156 + $0x10] sm:%s149]
                %161 = vst [vmem:[%s157 + $0x8] sm:%s149] %v160
                %v162 = vld [vmem:[%s156 + $0x20] sm:%s149]
                %163 = vst [vmem:[%s157 + $0x10] sm:%s149] %v162
                %v164 = vld [vmem:[%s156 + $0x30] sm:%s149]
                %165 = vst [vmem:[%s157 + $0x18] sm:%s149] %v164
                %v166 = vld [vmem:[%s156 + $0x40] sm:%s149]
                %167 = vst [vmem:[%s157 + $0x20] sm:%s149] %v166
                %v168 = vld [vmem:[%s156 + $0x50] sm:%s149]
                %169 = vst [vmem:[%s157 + $0x28] sm:%s149] %v168
                %v170 = vld [vmem:[%s156 + $0x60] sm:%s149]
                %171 = vst [vmem:[%s157 + $0x30] sm:%s149] %v170
                %v172 = vld [vmem:[%s156 + $0x70] sm:%s149]
                %173 = vst [vmem:[%s157 + $0x38] sm:%s149] %v172
                %v174 = vld [vmem:[%s156 + $0x80] sm:%s149]
                %175 = vst [vmem:[%s157 + $0x40] sm:%s149] %v174
              $region41: #{tpu_custom_call.1} parent=35 // loop_footer
                %s155 = sadd.s32 1, %s151
              $region42: #{tpu_custom_call.1} parent=35 // loop_footer_branch
                %150 = sbr.rel target = $region38
              $region43: #{tpu_custom_call.1} parent=35 // loop_exit
                _
            $region36: #{tpu_custom_call.1} parent=27 // pred_fallthru
              _
          $region28: #{tpu_custom_call.1} parent=23 // pred_fallthru
            _
          %206 = vnop
        $region24: #{tpu_custom_call.1} parent=19 // pred_fallthru
          _
        // Predicated region
        $region59: #{tpu_custom_call.1} parent=19 // pred_check
          %p207 = pneg %p58
        $region60: #{tpu_custom_call.1} parent=19 // pred_check_branch
          %209 = sbr.rel (%p207) target = $region62
        $region61: #{tpu_custom_call.1} parent=19 // pred_region
          %s210 = sand.u32 %s48, 1
          %s211 = sand.u32 %s48, 1
          %s212 = smul.addr %s211, 16
          %s213 = scalar_lea.vmem [#allocation3], %s212
          %s214 = smul.addr %s12, 8
          %s215 = scalar_lea.vmem %s1, %s214
          // Predicated region
          $region63: #{tpu_custom_call.1} parent=61 // pred_check
            _
          $region64: #{tpu_custom_call.1} parent=61 // pred_check_branch
            %217 = sbr.rel (0) target = $region66
          $region65: #{tpu_custom_call.1} parent=61 // pred_region
            // Predicated region
            $region67: #{tpu_custom_call.1} parent=65 // pred_check
              _
            $region68: #{tpu_custom_call.1} parent=65 // pred_check_branch
              %219 = sbr.rel (0) target = $region70
            $region69: #{tpu_custom_call.1} parent=65 // pred_region
              // Predicated region
              $region82: #{tpu_custom_call.1} parent=69 // pred_check
                _
              $region83: #{tpu_custom_call.1} parent=69 // pred_check_branch
                %237 = sbr.rel (0) target = $region85
              $region84: #{tpu_custom_call.1} parent=69 // pred_region
                loop: start=0, step=1, limit=1
                $region86: #{tpu_custom_call.1} parent=84 // loop_pre_header
                  _
                $region87: #{tpu_custom_call.1} parent=84 // loop_header
                  %s239 = sphi 0, %s243
                  %p240 = scmp.ge.s32.totalorder %s239, 1
                  %s244 = sphi %s215, %s215
                  %s245 = sphi %s213, %s213
                $region88: #{tpu_custom_call.1} parent=84 // loop_header_branch
                  %242 = sbr.rel (%p240) target = $region92
                $region89: #{tpu_custom_call.1} parent=84 // loop_body
                  %v246 = vld [vmem:[%s244] sm:$0xff]
                  %247 = vst [vmem:[%s245] sm:$0xff] %v246
                  %v248 = vld [vmem:[%s244 + $0x10] sm:$0xff]
                  %249 = vst [vmem:[%s245 + $0x8] sm:$0xff] %v248
                $region90: #{tpu_custom_call.1} parent=84 // loop_footer
                  %s243 = sadd.s32 1, %s239
                $region91: #{tpu_custom_call.1} parent=84 // loop_footer_branch
                  %238 = sbr.rel target = $region87
                $region92: #{tpu_custom_call.1} parent=84 // loop_exit
                  _
              $region85: #{tpu_custom_call.1} parent=69 // pred_fallthru
                _
              // Predicated region
              $region93: #{tpu_custom_call.1} parent=69 // pred_check
                _
              $region94: #{tpu_custom_call.1} parent=69 // pred_check_branch
                %251 = sbr.rel target = $region96
              $region95: #{tpu_custom_call.1} parent=69 // pred_region
                _
              $region96: #{tpu_custom_call.1} parent=69 // pred_fallthru
                _
            $region70: #{tpu_custom_call.1} parent=65 // pred_fallthru
              _
            // Predicated region
            $region71: #{tpu_custom_call.1} parent=65 // pred_check
              _
            $region72: #{tpu_custom_call.1} parent=65 // pred_check_branch
              %221 = sbr.rel target = $region74
            $region73: #{tpu_custom_call.1} parent=65 // pred_region
              %s223 = ssub.s32 256, 1
              loop: start=0, step=1, limit=1
              $region75: #{tpu_custom_call.1} parent=73 // loop_pre_header
                _
              $region76: #{tpu_custom_call.1} parent=73 // loop_header
                %s225 = sphi 0, %s229
                %p226 = scmp.ge.s32.totalorder %s225, 1
                %s230 = sphi %s215, %s215
                %s231 = sphi %s213, %s213
              $region77: #{tpu_custom_call.1} parent=73 // loop_header_branch
                %228 = sbr.rel (%p226) target = $region81
              $region78: #{tpu_custom_call.1} parent=73 // loop_body
                %v232 = vld [vmem:[%s230] sm:%s223]
                %233 = vst [vmem:[%s231] sm:%s223] %v232
                %v234 = vld [vmem:[%s230 + $0x10] sm:%s223]
                %235 = vst [vmem:[%s231 + $0x8] sm:%s223] %v234
              $region79: #{tpu_custom_call.1} parent=73 // loop_footer
                %s229 = sadd.s32 1, %s225
              $region80: #{tpu_custom_call.1} parent=73 // loop_footer_branch
                %224 = sbr.rel target = $region76
              $region81: #{tpu_custom_call.1} parent=73 // loop_exit
                _
            $region74: #{tpu_custom_call.1} parent=65 // pred_fallthru
              _
          $region66: #{tpu_custom_call.1} parent=61 // pred_fallthru
            _
          %252 = vnop
        $region62: #{tpu_custom_call.1} parent=19 // pred_fallthru
          _
      $region20: #{tpu_custom_call.1} parent=5 // pred_fallthru
        _
      %p253 = scmp.le.s32.totalorder 1, %s12
      %p254 = scmp.lt.s32.totalorder %s12, 3
      %p255 = pnand %p253, %p254
      %p256 = pneg %p255
      // Predicated region
      $region97: #{tpu_custom_call.1} parent=5 // pred_check
        _
      $region98: #{tpu_custom_call.1} parent=5 // pred_check_branch
        %258 = sbr.rel (%p255) target = $region100
      $region99: #{tpu_custom_call.1} parent=5 // pred_region
        %s259 = ssub.s32 %s12, 1
        %s260 = sand.u32 %s25, 1
        %s261 = sand.u32 %s25, 1
        %s262 = smul.addr %s261, 72
        %s263 = scalar_lea.vmem [#allocation2], %s262
        // Predicated region
        $region101: #{tpu_custom_call.1} parent=99 // pred_check
          %p264 = pneg %p38
        $region102: #{tpu_custom_call.1} parent=99 // pred_check_branch
          %266 = sbr.rel (%p264) target = $region104
        $region103: #{tpu_custom_call.1} parent=99 // pred_region
          _
        $region104: #{tpu_custom_call.1} parent=99 // pred_fallthru
          _
        %s267 = sand.u32 %s51, 1
        %s268 = sand.u32 %s51, 1
        %s269 = smul.addr %s268, 16
        %s270 = scalar_lea.vmem [#allocation3], %s269
        // Predicated region
        $region105: #{tpu_custom_call.1} parent=99 // pred_check
          %p271 = pneg %p64
        $region106: #{tpu_custom_call.1} parent=99 // pred_check_branch
          %273 = sbr.rel (%p271) target = $region108
        $region107: #{tpu_custom_call.1} parent=99 // pred_region
          _
        $region108: #{tpu_custom_call.1} parent=99 // pred_fallthru
          _
        %s274 = sand.u32 %s25, 1
        %s275 = sand.u32 %s25, 1
        %s276 = smul.addr %s275, 72
        %s277 = scalar_lea.vmem [#allocation2], %s276
        %p278 = pneg %p38
        %p279 = pneg %p35
        %s280 = sand.u32 %s51, 1
        %s281 = sand.u32 %s51, 1
        %s282 = smul.addr %s281, 16
        %s283 = scalar_lea.vmem [#allocation3], %s282
        %p284 = pneg %p64
        %p285 = pneg %p61
        %p286 = pneg %p85
        %p287 = pneg %p82
        %p288 = pneg %p111
        %p289 = pneg %p108
        %s290 = sand.u32 %s98, 1
        %s291 = scalar_lea.sflag [#allocation5], %s290
        %s292 = sand.u32 %s98, 1
        %s293 = smul.addr %s292, 8
        %s294 = scalar_lea.vmem [#allocation4], %s293
        %v295 = vld [vmem:[%s2] sm:$0xff]
        %v296 = vld [vmem:[%s2 + $0x8] sm:$0xff]
        %v297 = vld [vmem:[%s2 + $0x10] sm:$0xff]
        %v298 = vld [vmem:[%s2 + $0x18] sm:$0xff]
        %v299 = vld [vmem:[%s2 + $0x20] sm:$0xff]
        %v300 = vld [vmem:[%s2 + $0x28] sm:$0xff]
        %v301 = vld [vmem:[%s2 + $0x38] sm:$0xff]
        %v302 = vld [vmem:[%s2 + $0x40] sm:$0xff]
        %v303 = vld [vmem:[%s2 + $0x48] sm:$0xff]
        %v304 = vld [vmem:[%s2 + $0x50] sm:$0xff]
        %v305 = vld [vmem:[%s2 + $0x58] sm:$0xff]
        %v306 = vld [vmem:[%s2 + $0x60] sm:$0xff]
        %v307 = vld [vmem:[%s2 + $0x68] sm:$0xff]
        %v308 = vld [vmem:[%s2 + $0x70] sm:$0xff]
        %v309 = vld [vmem:[%s2 + $0x80] sm:$0xff]
        %v310 = vld [vmem:[%s2 + $0x88] sm:$0xff]
        %v311 = vld [vmem:[%s2 + $0x90] sm:$0xff]
        %v312 = vld [vmem:[%s2 + $0x98] sm:$0xff]
        %v313 = vld [vmem:[%s2 + $0x30] sm:$0x1]
        %v314 = vld [vmem:[%s2 + $0x78] sm:$0x1]
        %v315 = vld [vmem:[%s2 + $0xa0] sm:$0x1]
        %v316 = vld [vmem:[%s263] sm:$0xff]
        %v317 = vld [vmem:[%s263 + $0x8] sm:$0xff]
        %v318 = vld [vmem:[%s263 + $0x10] sm:$0xff]
        %v319 = vld [vmem:[%s263 + $0x18] sm:$0xff]
        %v320 = vld [vmem:[%s263 + $0x20] sm:$0xff]
        %v321 = vld [vmem:[%s263 + $0x28] sm:$0xff]
        %v322 = vld [vmem:[%s263 + $0x30] sm:$0xff]
        %v323 = vld [vmem:[%s263 + $0x38] sm:$0xff]
        %v324 = vld [vmem:[%s263 + $0x40] sm:$0xff]
        %v325 = vlaneseq
        %v326 = vshrl.u32 %v325, 7
        %v327 = vsub.s32 0, %v326
        %v328 = vrot.slane %v313, %v327
        %vm329 = vcmask 130048
        %v331 = vsel %vm329, %v316, 0
        %v334 = vsel %vm329, %v317, 0
        %v337 = vsel %vm329, %v318, 0
        %v340 = vsel %vm329, %v319, 0
        %v343 = vsel %vm329, %v320, 0
        %v346 = vsel %vm329, %v321, 0
        %v349 = vsel %vm329, %v322, 0
        %v352 = vsel %vm329, %v323, 0
        %v355 = vsel %vm329, %v324, 0
        %357 = vmatprep.subr.mxu0 0.0
        %358 = vmatpush1.msra.mxu0 0.0
        %359 = vmatprep.subr.mxu0 0.0
        %360 = vmatpush1.msra.mxu0 0.0
        %361 = vmatprep.subr.mxu0 0.0
        %362 = vmatpush1.msra.mxu0 0.0
        %363 = vmatprep.subr.mxu0 0.0
        %364 = vmatpush1.msra.mxu0 0.0
        %365 = vmatprep.subr.mxu0 0.0
        %366 = vmatpush1.msra.mxu0 0.0
        %367 = vmatprep.subr.mxu0 0.0
        %368 = vmatpush1.msra.mxu0 0.0
        %369 = vmatprep.subr.mxu0 0.0
        %370 = vmatpush1.msra.mxu0 0.0
        %371 = vmatprep.subr.mxu0 0.0
        %372 = vmatpush1.msra.mxu0 0.0
        %373 = vmatprep.subr.mxu0 0.0
        %374 = vmatpush1.msra.mxu0 0.0
        %375 = vmatprep.subr.mxu0 0.0
        %376 = vmatpush1.msra.mxu0 0.0
        %377 = vmatprep.subr.mxu0 0.0
        %378 = vmatpush1.msra.mxu0 0.0
        %379 = vmatprep.subr.mxu0 0.0
        %380 = vmatpush1.msra.mxu0 0.0
        %381 = vmatprep.subr.mxu0 0.0
        %382 = vmatpush1.msra.mxu0 0.0
        %383 = vmatprep.subr.mxu0 0.0
        %384 = vmatpush1.msra.mxu0 0.0
        %385 = vmatprep.subr.mxu0 0.0
        %386 = vmatpush1.msra.mxu0 %v296
        %387 = vmatprep.subr.mxu0 0.0
        %388 = vmatpush1.msra.mxu0 %v295
        %389 = vmatprep.subr.mxu0 0.0
        %390 = vmatpush2.msra.mxu0 0.0
        %391 = vmatprep.subr.mxu0 0.0
        %392 = vmatpush2.msra.mxu0 0.0
        %393 = vmatprep.subr.mxu0 0.0
        %394 = vmatpush2.msra.mxu0 0.0
        %395 = vmatprep.subr.mxu0 0.0
        %396 = vmatpush2.msra.mxu0 0.0
        %397 = vmatprep.subr.mxu0 0.0
        %398 = vmatpush2.msra.mxu0 0.0
        %399 = vmatprep.subr.mxu0 0.0
        %400 = vmatpush2.msra.mxu0 0.0
        %401 = vmatprep.subr.mxu0 0.0
        %402 = vmatpush2.msra.mxu0 0.0
        %403 = vmatprep.subr.mxu0 0.0
        %404 = vmatpush2.msra.mxu0 0.0
        %405 = vmatprep.subr.mxu0 0.0
        %406 = vmatpush2.msra.mxu0 0.0
        %407 = vmatprep.subr.mxu0 0.0
        %408 = vmatpush2.msra.mxu0 0.0
        %409 = vmatprep.subr.mxu0 0.0
        %410 = vmatpush2.msra.mxu0 0.0
        %411 = vmatprep.subr.mxu0 0.0
        %412 = vmatpush2.msra.mxu0 0.0
        %413 = vmatprep.subr.mxu0 0.0
        %414 = vmatpush2.msra.mxu0 0.0
        %415 = vmatprep.subr.mxu0 0.0
        %416 = vmatpush2.msra.mxu0 0.0
        %417 = vmatprep.subr.mxu0 0.0
        %418 = vmatpush2.msra.mxu0 0.0
        %419 = vmatprep.subr.mxu0 0.0
        %420 = vmatpush2.msra.mxu0 0.0
        %421 = vmatprep.mubr.f32.mxu0 0.0
        %422 = vmatmul.mubr.f32.gmra.mxu0 %v331
        %v423 = vpop.f32.mrf.mxu0
        %v424 = vadd.f32 %v328, %v423
        %v425 = vpop.f32.mrf.mxu0
        %426 = vmatprep.mubr.f32.mxu0 0.0
        %427 = vmatmul.mubr.f32.gmra.mxu0 %v334
        %v428 = vpop.f32.mrf.mxu0
        %v429 = vadd.f32 %v328, %v428
        %v430 = vpop.f32.mrf.mxu0
        %431 = vmatprep.mubr.f32.mxu0 0.0
        %432 = vmatmul.mubr.f32.gmra.mxu0 %v337
        %v433 = vpop.f32.mrf.mxu0
        %v434 = vadd.f32 %v328, %v433
        %v435 = vpop.f32.mrf.mxu0
        %436 = vmatprep.mubr.f32.mxu0 0.0
        %437 = vmatmul.mubr.f32.gmra.mxu0 %v340
        %v438 = vpop.f32.mrf.mxu0
        %v439 = vadd.f32 %v328, %v438
        %v440 = vpop.f32.mrf.mxu0
        %441 = vmatprep.mubr.f32.mxu0 0.0
        %442 = vmatmul.mubr.f32.gmra.mxu0 %v343
        %v443 = vpop.f32.mrf.mxu0
        %v444 = vadd.f32 %v328, %v443
        %v445 = vpop.f32.mrf.mxu0
        %446 = vmatprep.mubr.f32.mxu0 0.0
        %447 = vmatmul.mubr.f32.gmra.mxu0 %v346
        %v448 = vpop.f32.mrf.mxu0
        %v449 = vadd.f32 %v328, %v448
        %v450 = vpop.f32.mrf.mxu0
        %451 = vmatprep.mubr.f32.mxu0 0.0
        %452 = vmatmul.mubr.f32.gmra.mxu0 %v349
        %v453 = vpop.f32.mrf.mxu0
        %v454 = vadd.f32 %v328, %v453
        %v455 = vpop.f32.mrf.mxu0
        %456 = vmatprep.mubr.f32.mxu0 0.0
        %457 = vmatmul.mubr.f32.gmra.mxu0 %v352
        %v458 = vpop.f32.mrf.mxu0
        %v459 = vadd.f32 %v328, %v458
        %v460 = vpop.f32.mrf.mxu0
        %461 = vmatprep.mubr.f32.mxu0 0.0
        %462 = vmatmul.mubr.f32.gmra.mxu0 %v355
        %v463 = vpop.f32.mrf.mxu0
        %v464 = vadd.f32 %v328, %v463
        %v465 = vpop.f32.mrf.mxu0
        %466 = vdwg.mxu0
        %v467 = vld [vmem:[%s270] sm:$0xff]
        %s468 = scalar_lea.vmem %s270, 8 [#allocation3]
        %v469 = vld [vmem:[%s468] sm:$0xff]
        %vm470 = vcmask 261120
        %v472 = vsel %vm470, %v467, 0
        %474 = vmatprep.subr.mxu0 0.0
        %475 = vmatpush1.msra.mxu0 0.0
        %476 = vmatprep.subr.mxu0 0.0
        %477 = vmatpush1.msra.mxu0 0.0
        %478 = vmatprep.subr.mxu0 0.0
        %479 = vmatpush1.msra.mxu0 0.0
        %480 = vmatprep.subr.mxu0 0.0
        %481 = vmatpush1.msra.mxu0 0.0
        %482 = vmatprep.subr.mxu0 0.0
        %483 = vmatpush1.msra.mxu0 0.0
        %484 = vmatprep.subr.mxu0 0.0
        %485 = vmatpush1.msra.mxu0 0.0
        %486 = vmatprep.subr.mxu0 0.0
        %487 = vmatpush1.msra.mxu0 0.0
        %488 = vmatprep.subr.mxu0 0.0
        %489 = vmatpush1.msra.mxu0 0.0
        %490 = vmatprep.subr.mxu0 0.0
        %491 = vmatpush1.msra.mxu0 0.0
        %492 = vmatprep.subr.mxu0 0.0
        %493 = vmatpush1.msra.mxu0 0.0
        %494 = vmatprep.subr.mxu0 0.0
        %495 = vmatpush1.msra.mxu0 0.0
        %496 = vmatprep.subr.mxu0 0.0
        %497 = vmatpush1.msra.mxu0 0.0
        %498 = vmatprep.subr.mxu0 0.0
        %499 = vmatpush1.msra.mxu0 %v300
        %500 = vmatprep.subr.mxu0 0.0
        %501 = vmatpush1.msra.mxu0 %v299
        %502 = vmatprep.subr.mxu0 0.0
        %503 = vmatpush1.msra.mxu0 %v298
        %504 = vmatprep.subr.mxu0 0.0
        %505 = vmatpush1.msra.mxu0 %v297
        %506 = vmatprep.subr.mxu0 0.0
        %507 = vmatpush2.msra.mxu0 0.0
        %508 = vmatprep.subr.mxu0 0.0
        %509 = vmatpush2.msra.mxu0 0.0
        %510 = vmatprep.subr.mxu0 0.0
        %511 = vmatpush2.msra.mxu0 0.0
        %512 = vmatprep.subr.mxu0 0.0
        %513 = vmatpush2.msra.mxu0 0.0
        %514 = vmatprep.subr.mxu0 0.0
        %515 = vmatpush2.msra.mxu0 0.0
        %516 = vmatprep.subr.mxu0 0.0
        %517 = vmatpush2.msra.mxu0 0.0
        %518 = vmatprep.subr.mxu0 0.0
        %519 = vmatpush2.msra.mxu0 0.0
        %520 = vmatprep.subr.mxu0 0.0
        %521 = vmatpush2.msra.mxu0 0.0
        %522 = vmatprep.subr.mxu0 0.0
        %523 = vmatpush2.msra.mxu0 0.0
        %524 = vmatprep.subr.mxu0 0.0
        %525 = vmatpush2.msra.mxu0 0.0
        %526 = vmatprep.subr.mxu0 0.0
        %527 = vmatpush2.msra.mxu0 0.0
        %528 = vmatprep.subr.mxu0 0.0
        %529 = vmatpush2.msra.mxu0 0.0
        %530 = vmatprep.subr.mxu0 0.0
        %531 = vmatpush2.msra.mxu0 0.0
        %532 = vmatprep.subr.mxu0 0.0
        %533 = vmatpush2.msra.mxu0 0.0
        %534 = vmatprep.subr.mxu0 0.0
        %535 = vmatpush2.msra.mxu0 0.0
        %536 = vmatprep.subr.mxu0 0.0
        %537 = vmatpush2.msra.mxu0 0.0
        %538 = vmatprep.mubr.f32.mxu0 0.0
        %539 = vmatmul.mubr.f32.gmra.mxu0 %v472
        %v540 = vpop.f32.mrf.mxu0
        %v541 = vadd.f32 0.0, %v540
        %v542 = vpop.f32.mrf.mxu0
        %543 = vdwg.mxu0
        %v544 = vadd.f32 %v424, %v541
        %v545 = vtanh.pop %v544
        %v547 = vsel %vm470, %v545, 0
        %549 = vmatprep.subr.mxu0 0.0
        %550 = vmatpush1.msra.mxu0 0.0
        %551 = vmatprep.subr.mxu0 0.0
        %552 = vmatpush1.msra.mxu0 0.0
        %553 = vmatprep.subr.mxu0 0.0
        %554 = vmatpush1.msra.mxu0 0.0
        %555 = vmatprep.subr.mxu0 0.0
        %556 = vmatpush1.msra.mxu0 0.0
        %557 = vmatprep.subr.mxu0 0.0
        %558 = vmatpush1.msra.mxu0 0.0
        %559 = vmatprep.subr.mxu0 0.0
        %560 = vmatpush1.msra.mxu0 0.0
        %561 = vmatprep.subr.mxu0 0.0
        %562 = vmatpush1.msra.mxu0 0.0
        %563 = vmatprep.subr.mxu0 0.0
        %564 = vmatpush1.msra.mxu0 0.0
        %565 = vmatprep.subr.mxu0 0.0
        %566 = vmatpush1.msra.mxu0 0.0
        %567 = vmatprep.subr.mxu0 0.0
        %568 = vmatpush1.msra.mxu0 0.0
        %569 = vmatprep.subr.mxu0 0.0
        %570 = vmatpush1.msra.mxu0 0.0
        %571 = vmatprep.subr.mxu0 0.0
        %572 = vmatpush1.msra.mxu0 0.0
        %573 = vmatprep.subr.mxu0 0.0
        %574 = vmatpush1.msra.mxu0 %v304
        %575 = vmatprep.subr.mxu0 0.0
        %576 = vmatpush1.msra.mxu0 %v303
        %577 = vmatprep.subr.mxu0 0.0
        %578 = vmatpush1.msra.mxu0 %v302
        %579 = vmatprep.subr.mxu0 0.0
        %580 = vmatpush1.msra.mxu0 %v301
        %581 = vmatprep.subr.mxu0 0.0
        %582 = vmatpush2.msra.mxu0 0.0
        %583 = vmatprep.subr.mxu0 0.0
        %584 = vmatpush2.msra.mxu0 0.0
        %585 = vmatprep.subr.mxu0 0.0
        %586 = vmatpush2.msra.mxu0 0.0
        %587 = vmatprep.subr.mxu0 0.0
        %588 = vmatpush2.msra.mxu0 0.0
        %589 = vmatprep.subr.mxu0 0.0
        %590 = vmatpush2.msra.mxu0 0.0
        %591 = vmatprep.subr.mxu0 0.0
        %592 = vmatpush2.msra.mxu0 0.0
        %593 = vmatprep.subr.mxu0 0.0
        %594 = vmatpush2.msra.mxu0 0.0
        %595 = vmatprep.subr.mxu0 0.0
        %596 = vmatpush2.msra.mxu0 0.0
        %597 = vmatprep.subr.mxu0 0.0
        %598 = vmatpush2.msra.mxu0 0.0
        %599 = vmatprep.subr.mxu0 0.0
        %600 = vmatpush2.msra.mxu0 0.0
        %601 = vmatprep.subr.mxu0 0.0
        %602 = vmatpush2.msra.mxu0 0.0
        %603 = vmatprep.subr.mxu0 0.0
        %604 = vmatpush2.msra.mxu0 0.0
        %605 = vmatprep.subr.mxu0 0.0
        %606 = vmatpush2.msra.mxu0 0.0
        %607 = vmatprep.subr.mxu0 0.0
        %608 = vmatpush2.msra.mxu0 0.0
        %609 = vmatprep.subr.mxu0 0.0
        %610 = vmatpush2.msra.mxu0 0.0
        %611 = vmatprep.subr.mxu0 0.0
        %612 = vmatpush2.msra.mxu0 0.0
        %613 = vmatprep.mubr.f32.mxu0 0.0
        %614 = vmatmul.mubr.f32.gmra.mxu0 %v547
        %v615 = vpop.f32.mrf.mxu0
        %v616 = vadd.f32 0.0, %v615
        %v617 = vpop.f32.mrf.mxu0
        %618 = vdwg.mxu0
        %v619 = vlaneseq
        %v620 = vshrl.u32 %v619, 7
        %v621 = vsub.s32 0, %v620
        %v622 = vrot.slane %v314, %v621
        %v623 = vadd.f32 %v622, %v616
        %v625 = vsel %vm470, %v469, 0
        %627 = vmatprep.subr.mxu0 0.0
        %628 = vmatpush1.msra.mxu0 0.0
        %629 = vmatprep.subr.mxu0 0.0
        %630 = vmatpush1.msra.mxu0 0.0
        %631 = vmatprep.subr.mxu0 0.0
        %632 = vmatpush1.msra.mxu0 0.0
        %633 = vmatprep.subr.mxu0 0.0
        %634 = vmatpush1.msra.mxu0 0.0
        %635 = vmatprep.subr.mxu0 0.0
        %636 = vmatpush1.msra.mxu0 0.0
        %637 = vmatprep.subr.mxu0 0.0
        %638 = vmatpush1.msra.mxu0 0.0
        %639 = vmatprep.subr.mxu0 0.0
        %640 = vmatpush1.msra.mxu0 0.0
        %641 = vmatprep.subr.mxu0 0.0
        %642 = vmatpush1.msra.mxu0 0.0
        %643 = vmatprep.subr.mxu0 0.0
        %644 = vmatpush1.msra.mxu0 0.0
        %645 = vmatprep.subr.mxu0 0.0
        %646 = vmatpush1.msra.mxu0 0.0
        %647 = vmatprep.subr.mxu0 0.0
        %648 = vmatpush1.msra.mxu0 0.0
        %649 = vmatprep.subr.mxu0 0.0
        %650 = vmatpush1.msra.mxu0 0.0
        %651 = vmatprep.subr.mxu0 0.0
        %652 = vmatpush1.msra.mxu0 %v308
        %653 = vmatprep.subr.mxu0 0.0
        %654 = vmatpush1.msra.mxu0 %v307
        %655 = vmatprep.subr.mxu0 0.0
        %656 = vmatpush1.msra.mxu0 %v306
        %657 = vmatprep.subr.mxu0 0.0
        %658 = vmatpush1.msra.mxu0 %v305
        %659 = vmatprep.subr.mxu0 0.0
        %660 = vmatpush2.msra.mxu0 0.0
        %661 = vmatprep.subr.mxu0 0.0
        %662 = vmatpush2.msra.mxu0 0.0
        %663 = vmatprep.subr.mxu0 0.0
        %664 = vmatpush2.msra.mxu0 0.0
        %665 = vmatprep.subr.mxu0 0.0
        %666 = vmatpush2.msra.mxu0 0.0
        %667 = vmatprep.subr.mxu0 0.0
        %668 = vmatpush2.msra.mxu0 0.0
        %669 = vmatprep.subr.mxu0 0.0
        %670 = vmatpush2.msra.mxu0 0.0
        %671 = vmatprep.subr.mxu0 0.0
        %672 = vmatpush2.msra.mxu0 0.0
        %673 = vmatprep.subr.mxu0 0.0
        %674 = vmatpush2.msra.mxu0 0.0
        %675 = vmatprep.subr.mxu0 0.0
        %676 = vmatpush2.msra.mxu0 0.0
        %677 = vmatprep.subr.mxu0 0.0
        %678 = vmatpush2.msra.mxu0 0.0
        %679 = vmatprep.subr.mxu0 0.0
        %680 = vmatpush2.msra.mxu0 0.0
        %681 = vmatprep.subr.mxu0 0.0
        %682 = vmatpush2.msra.mxu0 0.0
        %683 = vmatprep.subr.mxu0 0.0
        %684 = vmatpush2.msra.mxu0 0.0
        %685 = vmatprep.subr.mxu0 0.0
        %686 = vmatpush2.msra.mxu0 0.0
        %687 = vmatprep.subr.mxu0 0.0
        %688 = vmatpush2.msra.mxu0 0.0
        %689 = vmatprep.subr.mxu0 0.0
        %690 = vmatpush2.msra.mxu0 0.0
        %691 = vmatprep.mubr.f32.mxu0 0.0
        %692 = vmatmul.mubr.f32.gmra.mxu0 %v625
        %v693 = vpop.f32.mrf.mxu0
        %v694 = vadd.f32 0.0, %v693
        %v695 = vpop.f32.mrf.mxu0
        %696 = vdwg.mxu0
        %v697 = vadd.f32 %v623, %v694
        %v698 = vtanh.pop %v697
        %699 = vmatprep.subr.mxu0 0.0
        %700 = vmatpush1.msra.mxu0 0.0
        %701 = vmatprep.subr.mxu0 0.0
        %702 = vmatpush1.msra.mxu0 0.0
        %703 = vmatprep.subr.mxu0 0.0
        %704 = vmatpush1.msra.mxu0 0.0
        %705 = vmatprep.subr.mxu0 0.0
        %706 = vmatpush1.msra.mxu0 0.0
        %707 = vmatprep.subr.mxu0 0.0
        %708 = vmatpush1.msra.mxu0 0.0
        %709 = vmatprep.subr.mxu0 0.0
        %710 = vmatpush1.msra.mxu0 0.0
        %711 = vmatprep.subr.mxu0 0.0
        %712 = vmatpush1.msra.mxu0 0.0
        %713 = vmatprep.subr.mxu0 0.0
        %714 = vmatpush1.msra.mxu0 0.0
        %715 = vmatprep.subr.mxu0 0.0
        %716 = vmatpush1.msra.mxu0 0.0
        %717 = vmatprep.subr.mxu0 0.0
        %718 = vmatpush1.msra.mxu0 0.0
        %719 = vmatprep.subr.mxu0 0.0
        %720 = vmatpush1.msra.mxu0 0.0
        %721 = vmatprep.subr.mxu0 0.0
        %722 = vmatpush1.msra.mxu0 0.0
        %723 = vmatprep.subr.mxu0 0.0
        %724 = vmatpush1.msra.mxu0 %v300
        %725 = vmatprep.subr.mxu0 0.0
        %726 = vmatpush1.msra.mxu0 %v299
        %727 = vmatprep.subr.mxu0 0.0
        %728 = vmatpush1.msra.mxu0 %v298
        %729 = vmatprep.subr.mxu0 0.0
        %730 = vmatpush1.msra.mxu0 %v297
        %731 = vmatprep.subr.mxu0 0.0
        %732 = vmatpush2.msra.mxu0 0.0
        %733 = vmatprep.subr.mxu0 0.0
        %734 = vmatpush2.msra.mxu0 0.0
        %735 = vmatprep.subr.mxu0 0.0
        %736 = vmatpush2.msra.mxu0 0.0
        %737 = vmatprep.subr.mxu0 0.0
        %738 = vmatpush2.msra.mxu0 0.0
        %739 = vmatprep.subr.mxu0 0.0
        %740 = vmatpush2.msra.mxu0 0.0
        %741 = vmatprep.subr.mxu0 0.0
        %742 = vmatpush2.msra.mxu0 0.0
        %743 = vmatprep.subr.mxu0 0.0
        %744 = vmatpush2.msra.mxu0 0.0
        %745 = vmatprep.subr.mxu0 0.0
        %746 = vmatpush2.msra.mxu0 0.0
        %747 = vmatprep.subr.mxu0 0.0
        %748 = vmatpush2.msra.mxu0 0.0
        %749 = vmatprep.subr.mxu0 0.0
        %750 = vmatpush2.msra.mxu0 0.0
        %751 = vmatprep.subr.mxu0 0.0
        %752 = vmatpush2.msra.mxu0 0.0
        %753 = vmatprep.subr.mxu0 0.0
        %754 = vmatpush2.msra.mxu0 0.0
        %755 = vmatprep.subr.mxu0 0.0
        %756 = vmatpush2.msra.mxu0 0.0
        %757 = vmatprep.subr.mxu0 0.0
        %758 = vmatpush2.msra.mxu0 0.0
        %759 = vmatprep.subr.mxu0 0.0
        %760 = vmatpush2.msra.mxu0 0.0
        %761 = vmatprep.subr.mxu0 0.0
        %762 = vmatpush2.msra.mxu0 0.0
        %763 = vmatprep.mubr.f32.mxu0 0.0
        %764 = vmatmul.mubr.f32.gmra.mxu0 %v547
        %v765 = vpop.f32.mrf.mxu0
        %v766 = vadd.f32 0.0, %v765
        %v767 = vpop.f32.mrf.mxu0
        %768 = vdwg.mxu0
        %v769 = vadd.f32 %v429, %v766
        %v770 = vtanh.pop %v769
        %v772 = vsel %vm470, %v770, 0
        %774 = vmatprep.subr.mxu0 0.0
        %775 = vmatpush1.msra.mxu0 0.0
        %776 = vmatprep.subr.mxu0 0.0
        %777 = vmatpush1.msra.mxu0 0.0
        %778 = vmatprep.subr.mxu0 0.0
        %779 = vmatpush1.msra.mxu0 0.0
        %780 = vmatprep.subr.mxu0 0.0
        %781 = vmatpush1.msra.mxu0 0.0
        %782 = vmatprep.subr.mxu0 0.0
        %783 = vmatpush1.msra.mxu0 0.0
        %784 = vmatprep.subr.mxu0 0.0
        %785 = vmatpush1.msra.mxu0 0.0
        %786 = vmatprep.subr.mxu0 0.0
        %787 = vmatpush1.msra.mxu0 0.0
        %788 = vmatprep.subr.mxu0 0.0
        %789 = vmatpush1.msra.mxu0 0.0
        %790 = vmatprep.subr.mxu0 0.0
        %791 = vmatpush1.msra.mxu0 0.0
        %792 = vmatprep.subr.mxu0 0.0
        %793 = vmatpush1.msra.mxu0 0.0
        %794 = vmatprep.subr.mxu0 0.0
        %795 = vmatpush1.msra.mxu0 0.0
        %796 = vmatprep.subr.mxu0 0.0
        %797 = vmatpush1.msra.mxu0 0.0
        %798 = vmatprep.subr.mxu0 0.0
        %799 = vmatpush1.msra.mxu0 %v304
        %800 = vmatprep.subr.mxu0 0.0
        %801 = vmatpush1.msra.mxu0 %v303
        %802 = vmatprep.subr.mxu0 0.0
        %803 = vmatpush1.msra.mxu0 %v302
        %804 = vmatprep.subr.mxu0 0.0
        %805 = vmatpush1.msra.mxu0 %v301
        %806 = vmatprep.subr.mxu0 0.0
        %807 = vmatpush2.msra.mxu0 0.0
        %808 = vmatprep.subr.mxu0 0.0
        %809 = vmatpush2.msra.mxu0 0.0
        %810 = vmatprep.subr.mxu0 0.0
        %811 = vmatpush2.msra.mxu0 0.0
        %812 = vmatprep.subr.mxu0 0.0
        %813 = vmatpush2.msra.mxu0 0.0
        %814 = vmatprep.subr.mxu0 0.0
        %815 = vmatpush2.msra.mxu0 0.0
        %816 = vmatprep.subr.mxu0 0.0
        %817 = vmatpush2.msra.mxu0 0.0
        %818 = vmatprep.subr.mxu0 0.0
        %819 = vmatpush2.msra.mxu0 0.0
        %820 = vmatprep.subr.mxu0 0.0
        %821 = vmatpush2.msra.mxu0 0.0
        %822 = vmatprep.subr.mxu0 0.0
        %823 = vmatpush2.msra.mxu0 0.0
        %824 = vmatprep.subr.mxu0 0.0
        %825 = vmatpush2.msra.mxu0 0.0
        %826 = vmatprep.subr.mxu0 0.0
        %827 = vmatpush2.msra.mxu0 0.0
        %828 = vmatprep.subr.mxu0 0.0
        %829 = vmatpush2.msra.mxu0 0.0
        %830 = vmatprep.subr.mxu0 0.0
        %831 = vmatpush2.msra.mxu0 0.0
        %832 = vmatprep.subr.mxu0 0.0
        %833 = vmatpush2.msra.mxu0 0.0
        %834 = vmatprep.subr.mxu0 0.0
        %835 = vmatpush2.msra.mxu0 0.0
        %836 = vmatprep.subr.mxu0 0.0
        %837 = vmatpush2.msra.mxu0 0.0
        %838 = vmatprep.mubr.f32.mxu0 0.0
        %839 = vmatmul.mubr.f32.gmra.mxu0 %v772
        %v840 = vpop.f32.mrf.mxu0
        %v841 = vadd.f32 0.0, %v840
        %v842 = vpop.f32.mrf.mxu0
        %843 = vdwg.mxu0
        %v844 = vadd.f32 %v622, %v841
        %v846 = vsel %vm470, %v698, 0
        %848 = vmatprep.subr.mxu0 0.0
        %849 = vmatpush1.msra.mxu0 0.0
        %850 = vmatprep.subr.mxu0 0.0
        %851 = vmatpush1.msra.mxu0 0.0
        %852 = vmatprep.subr.mxu0 0.0
        %853 = vmatpush1.msra.mxu0 0.0
        %854 = vmatprep.subr.mxu0 0.0
        %855 = vmatpush1.msra.mxu0 0.0
        %856 = vmatprep.subr.mxu0 0.0
        %857 = vmatpush1.msra.mxu0 0.0
        %858 = vmatprep.subr.mxu0 0.0
        %859 = vmatpush1.msra.mxu0 0.0
        %860 = vmatprep.subr.mxu0 0.0
        %861 = vmatpush1.msra.mxu0 0.0
        %862 = vmatprep.subr.mxu0 0.0
        %863 = vmatpush1.msra.mxu0 0.0
        %864 = vmatprep.subr.mxu0 0.0
        %865 = vmatpush1.msra.mxu0 0.0
        %866 = vmatprep.subr.mxu0 0.0
        %867 = vmatpush1.msra.mxu0 0.0
        %868 = vmatprep.subr.mxu0 0.0
        %869 = vmatpush1.msra.mxu0 0.0
        %870 = vmatprep.subr.mxu0 0.0
        %871 = vmatpush1.msra.mxu0 0.0
        %872 = vmatprep.subr.mxu0 0.0
        %873 = vmatpush1.msra.mxu0 %v308
        %874 = vmatprep.subr.mxu0 0.0
        %875 = vmatpush1.msra.mxu0 %v307
        %876 = vmatprep.subr.mxu0 0.0
        %877 = vmatpush1.msra.mxu0 %v306
        %878 = vmatprep.subr.mxu0 0.0
        %879 = vmatpush1.msra.mxu0 %v305
        %880 = vmatprep.subr.mxu0 0.0
        %881 = vmatpush2.msra.mxu0 0.0
        %882 = vmatprep.subr.mxu0 0.0
        %883 = vmatpush2.msra.mxu0 0.0
        %884 = vmatprep.subr.mxu0 0.0
        %885 = vmatpush2.msra.mxu0 0.0
        %886 = vmatprep.subr.mxu0 0.0
        %887 = vmatpush2.msra.mxu0 0.0
        %888 = vmatprep.subr.mxu0 0.0
        %889 = vmatpush2.msra.mxu0 0.0
        %890 = vmatprep.subr.mxu0 0.0
        %891 = vmatpush2.msra.mxu0 0.0
        %892 = vmatprep.subr.mxu0 0.0
        %893 = vmatpush2.msra.mxu0 0.0
        %894 = vmatprep.subr.mxu0 0.0
        %895 = vmatpush2.msra.mxu0 0.0
        %896 = vmatprep.subr.mxu0 0.0
        %897 = vmatpush2.msra.mxu0 0.0
        %898 = vmatprep.subr.mxu0 0.0
        %899 = vmatpush2.msra.mxu0 0.0
        %900 = vmatprep.subr.mxu0 0.0
        %901 = vmatpush2.msra.mxu0 0.0
        %902 = vmatprep.subr.mxu0 0.0
        %903 = vmatpush2.msra.mxu0 0.0
        %904 = vmatprep.subr.mxu0 0.0
        %905 = vmatpush2.msra.mxu0 0.0
        %906 = vmatprep.subr.mxu0 0.0
        %907 = vmatpush2.msra.mxu0 0.0
        %908 = vmatprep.subr.mxu0 0.0
        %909 = vmatpush2.msra.mxu0 0.0
        %910 = vmatprep.subr.mxu0 0.0
        %911 = vmatpush2.msra.mxu0 0.0
        %912 = vmatprep.mubr.f32.mxu0 0.0
        %913 = vmatmul.mubr.f32.gmra.mxu0 %v846
        %v914 = vpop.f32.mrf.mxu0
        %v915 = vadd.f32 0.0, %v914
        %v916 = vpop.f32.mrf.mxu0
        %917 = vdwg.mxu0
        %v918 = vadd.f32 %v844, %v915
        %v919 = vtanh.pop %v918
        %920 = vmatprep.subr.mxu0 0.0
        %921 = vmatpush1.msra.mxu0 0.0
        %922 = vmatprep.subr.mxu0 0.0
        %923 = vmatpush1.msra.mxu0 0.0
        %924 = vmatprep.subr.mxu0 0.0
        %925 = vmatpush1.msra.mxu0 0.0
        %926 = vmatprep.subr.mxu0 0.0
        %927 = vmatpush1.msra.mxu0 0.0
        %928 = vmatprep.subr.mxu0 0.0
        %929 = vmatpush1.msra.mxu0 0.0
        %930 = vmatprep.subr.mxu0 0.0
        %931 = vmatpush1.msra.mxu0 0.0
        %932 = vmatprep.subr.mxu0 0.0
        %933 = vmatpush1.msra.mxu0 0.0
        %934 = vmatprep.subr.mxu0 0.0
        %935 = vmatpush1.msra.mxu0 0.0
        %936 = vmatprep.subr.mxu0 0.0
        %937 = vmatpush1.msra.mxu0 0.0
        %938 = vmatprep.subr.mxu0 0.0
        %939 = vmatpush1.msra.mxu0 0.0
        %940 = vmatprep.subr.mxu0 0.0
        %941 = vmatpush1.msra.mxu0 0.0
        %942 = vmatprep.subr.mxu0 0.0
        %943 = vmatpush1.msra.mxu0 0.0
        %944 = vmatprep.subr.mxu0 0.0
        %945 = vmatpush1.msra.mxu0 %v300
        %946 = vmatprep.subr.mxu0 0.0
        %947 = vmatpush1.msra.mxu0 %v299
        %948 = vmatprep.subr.mxu0 0.0
        %949 = vmatpush1.msra.mxu0 %v298
        %950 = vmatprep.subr.mxu0 0.0
        %951 = vmatpush1.msra.mxu0 %v297
        %952 = vmatprep.subr.mxu0 0.0
        %953 = vmatpush2.msra.mxu0 0.0
        %954 = vmatprep.subr.mxu0 0.0
        %955 = vmatpush2.msra.mxu0 0.0
        %956 = vmatprep.subr.mxu0 0.0
        %957 = vmatpush2.msra.mxu0 0.0
        %958 = vmatprep.subr.mxu0 0.0
        %959 = vmatpush2.msra.mxu0 0.0
        %960 = vmatprep.subr.mxu0 0.0
        %961 = vmatpush2.msra.mxu0 0.0
        %962 = vmatprep.subr.mxu0 0.0
        %963 = vmatpush2.msra.mxu0 0.0
        %964 = vmatprep.subr.mxu0 0.0
        %965 = vmatpush2.msra.mxu0 0.0
        %966 = vmatprep.subr.mxu0 0.0
        %967 = vmatpush2.msra.mxu0 0.0
        %968 = vmatprep.subr.mxu0 0.0
        %969 = vmatpush2.msra.mxu0 0.0
        %970 = vmatprep.subr.mxu0 0.0
        %971 = vmatpush2.msra.mxu0 0.0
        %972 = vmatprep.subr.mxu0 0.0
        %973 = vmatpush2.msra.mxu0 0.0
        %974 = vmatprep.subr.mxu0 0.0
        %975 = vmatpush2.msra.mxu0 0.0
        %976 = vmatprep.subr.mxu0 0.0
        %977 = vmatpush2.msra.mxu0 0.0
        %978 = vmatprep.subr.mxu0 0.0
        %979 = vmatpush2.msra.mxu0 0.0
        %980 = vmatprep.subr.mxu0 0.0
        %981 = vmatpush2.msra.mxu0 0.0
        %982 = vmatprep.subr.mxu0 0.0
        %983 = vmatpush2.msra.mxu0 0.0
        %984 = vmatprep.mubr.f32.mxu0 0.0
        %985 = vmatmul.mubr.f32.gmra.mxu0 %v772
        %v986 = vpop.f32.mrf.mxu0
        %v987 = vadd.f32 0.0, %v986
        %v988 = vpop.f32.mrf.mxu0
        %989 = vdwg.mxu0
        %v990 = vadd.f32 %v434, %v987
        %v991 = vtanh.pop %v990
        %v993 = vsel %vm470, %v991, 0
        %995 = vmatprep.subr.mxu0 0.0
        %996 = vmatpush1.msra.mxu0 0.0
        %997 = vmatprep.subr.mxu0 0.0
        %998 = vmatpush1.msra.mxu0 0.0
        %999 = vmatprep.subr.mxu0 0.0
        %1000 = vmatpush1.msra.mxu0 0.0
        %1001 = vmatprep.subr.mxu0 0.0
        %1002 = vmatpush1.msra.mxu0 0.0
        %1003 = vmatprep.subr.mxu0 0.0
        %1004 = vmatpush1.msra.mxu0 0.0
        %1005 = vmatprep.subr.mxu0 0.0
        %1006 = vmatpush1.msra.mxu0 0.0
        %1007 = vmatprep.subr.mxu0 0.0
        %1008 = vmatpush1.msra.mxu0 0.0
        %1009 = vmatprep.subr.mxu0 0.0
        %1010 = vmatpush1.msra.mxu0 0.0
        %1011 = vmatprep.subr.mxu0 0.0
        %1012 = vmatpush1.msra.mxu0 0.0
        %1013 = vmatprep.subr.mxu0 0.0
        %1014 = vmatpush1.msra.mxu0 0.0
        %1015 = vmatprep.subr.mxu0 0.0
        %1016 = vmatpush1.msra.mxu0 0.0
        %1017 = vmatprep.subr.mxu0 0.0
        %1018 = vmatpush1.msra.mxu0 0.0
        %1019 = vmatprep.subr.mxu0 0.0
        %1020 = vmatpush1.msra.mxu0 %v304
        %1021 = vmatprep.subr.mxu0 0.0
        %1022 = vmatpush1.msra.mxu0 %v303
        %1023 = vmatprep.subr.mxu0 0.0
        %1024 = vmatpush1.msra.mxu0 %v302
        %1025 = vmatprep.subr.mxu0 0.0
        %1026 = vmatpush1.msra.mxu0 %v301
        %1027 = vmatprep.subr.mxu0 0.0
        %1028 = vmatpush2.msra.mxu0 0.0
        %1029 = vmatprep.subr.mxu0 0.0
        %1030 = vmatpush2.msra.mxu0 0.0
        %1031 = vmatprep.subr.mxu0 0.0
        %1032 = vmatpush2.msra.mxu0 0.0
        %1033 = vmatprep.subr.mxu0 0.0
        %1034 = vmatpush2.msra.mxu0 0.0
        %1035 = vmatprep.subr.mxu0 0.0
        %1036 = vmatpush2.msra.mxu0 0.0
        %1037 = vmatprep.subr.mxu0 0.0
        %1038 = vmatpush2.msra.mxu0 0.0
        %1039 = vmatprep.subr.mxu0 0.0
        %1040 = vmatpush2.msra.mxu0 0.0
        %1041 = vmatprep.subr.mxu0 0.0
        %1042 = vmatpush2.msra.mxu0 0.0
        %1043 = vmatprep.subr.mxu0 0.0
        %1044 = vmatpush2.msra.mxu0 0.0
        %1045 = vmatprep.subr.mxu0 0.0
        %1046 = vmatpush2.msra.mxu0 0.0
        %1047 = vmatprep.subr.mxu0 0.0
        %1048 = vmatpush2.msra.mxu0 0.0
        %1049 = vmatprep.subr.mxu0 0.0
        %1050 = vmatpush2.msra.mxu0 0.0
        %1051 = vmatprep.subr.mxu0 0.0
        %1052 = vmatpush2.msra.mxu0 0.0
        %1053 = vmatprep.subr.mxu0 0.0
        %1054 = vmatpush2.msra.mxu0 0.0
        %1055 = vmatprep.subr.mxu0 0.0
        %1056 = vmatpush2.msra.mxu0 0.0
        %1057 = vmatprep.subr.mxu0 0.0
        %1058 = vmatpush2.msra.mxu0 0.0
        %1059 = vmatprep.mubr.f32.mxu0 0.0
        %1060 = vmatmul.mubr.f32.gmra.mxu0 %v993
        %v1061 = vpop.f32.mrf.mxu0
        %v1062 = vadd.f32 0.0, %v1061
        %v1063 = vpop.f32.mrf.mxu0
        %1064 = vdwg.mxu0
        %v1065 = vadd.f32 %v622, %v1062
        %v1067 = vsel %vm470, %v919, 0
        %1069 = vmatprep.subr.mxu0 0.0
        %1070 = vmatpush1.msra.mxu0 0.0
        %1071 = vmatprep.subr.mxu0 0.0
        %1072 = vmatpush1.msra.mxu0 0.0
        %1073 = vmatprep.subr.mxu0 0.0
        %1074 = vmatpush1.msra.mxu0 0.0
        %1075 = vmatprep.subr.mxu0 0.0
        %1076 = vmatpush1.msra.mxu0 0.0
        %1077 = vmatprep.subr.mxu0 0.0
        %1078 = vmatpush1.msra.mxu0 0.0
        %1079 = vmatprep.subr.mxu0 0.0
        %1080 = vmatpush1.msra.mxu0 0.0
        %1081 = vmatprep.subr.mxu0 0.0
        %1082 = vmatpush1.msra.mxu0 0.0
        %1083 = vmatprep.subr.mxu0 0.0
        %1084 = vmatpush1.msra.mxu0 0.0
        %1085 = vmatprep.subr.mxu0 0.0
        %1086 = vmatpush1.msra.mxu0 0.0
        %1087 = vmatprep.subr.mxu0 0.0
        %1088 = vmatpush1.msra.mxu0 0.0
        %1089 = vmatprep.subr.mxu0 0.0
        %1090 = vmatpush1.msra.mxu0 0.0
        %1091 = vmatprep.subr.mxu0 0.0
        %1092 = vmatpush1.msra.mxu0 0.0
        %1093 = vmatprep.subr.mxu0 0.0
        %1094 = vmatpush1.msra.mxu0 %v308
        %1095 = vmatprep.subr.mxu0 0.0
        %1096 = vmatpush1.msra.mxu0 %v307
        %1097 = vmatprep.subr.mxu0 0.0
        %1098 = vmatpush1.msra.mxu0 %v306
        %1099 = vmatprep.subr.mxu0 0.0
        %1100 = vmatpush1.msra.mxu0 %v305
        %1101 = vmatprep.subr.mxu0 0.0
        %1102 = vmatpush2.msra.mxu0 0.0
        %1103 = vmatprep.subr.mxu0 0.0
        %1104 = vmatpush2.msra.mxu0 0.0
        %1105 = vmatprep.subr.mxu0 0.0
        %1106 = vmatpush2.msra.mxu0 0.0
        %1107 = vmatprep.subr.mxu0 0.0
        %1108 = vmatpush2.msra.mxu0 0.0
        %1109 = vmatprep.subr.mxu0 0.0
        %1110 = vmatpush2.msra.mxu0 0.0
        %1111 = vmatprep.subr.mxu0 0.0
        %1112 = vmatpush2.msra.mxu0 0.0
        %1113 = vmatprep.subr.mxu0 0.0
        %1114 = vmatpush2.msra.mxu0 0.0
        %1115 = vmatprep.subr.mxu0 0.0
        %1116 = vmatpush2.msra.mxu0 0.0
        %1117 = vmatprep.subr.mxu0 0.0
        %1118 = vmatpush2.msra.mxu0 0.0
        %1119 = vmatprep.subr.mxu0 0.0
        %1120 = vmatpush2.msra.mxu0 0.0
        %1121 = vmatprep.subr.mxu0 0.0
        %1122 = vmatpush2.msra.mxu0 0.0
        %1123 = vmatprep.subr.mxu0 0.0
        %1124 = vmatpush2.msra.mxu0 0.0
        %1125 = vmatprep.subr.mxu0 0.0
        %1126 = vmatpush2.msra.mxu0 0.0
        %1127 = vmatprep.subr.mxu0 0.0
        %1128 = vmatpush2.msra.mxu0 0.0
        %1129 = vmatprep.subr.mxu0 0.0
        %1130 = vmatpush2.msra.mxu0 0.0
        %1131 = vmatprep.subr.mxu0 0.0
        %1132 = vmatpush2.msra.mxu0 0.0
        %1133 = vmatprep.mubr.f32.mxu0 0.0
        %1134 = vmatmul.mubr.f32.gmra.mxu0 %v1067
        %v1135 = vpop.f32.mrf.mxu0
        %v1136 = vadd.f32 0.0, %v1135
        %v1137 = vpop.f32.mrf.mxu0
        %1138 = vdwg.mxu0
        %v1139 = vadd.f32 %v1065, %v1136
        %v1140 = vtanh.pop %v1139
        %1141 = vmatprep.subr.mxu0 0.0
        %1142 = vmatpush1.msra.mxu0 0.0
        %1143 = vmatprep.subr.mxu0 0.0
        %1144 = vmatpush1.msra.mxu0 0.0
        %1145 = vmatprep.subr.mxu0 0.0
        %1146 = vmatpush1.msra.mxu0 0.0
        %1147 = vmatprep.subr.mxu0 0.0
        %1148 = vmatpush1.msra.mxu0 0.0
        %1149 = vmatprep.subr.mxu0 0.0
        %1150 = vmatpush1.msra.mxu0 0.0
        %1151 = vmatprep.subr.mxu0 0.0
        %1152 = vmatpush1.msra.mxu0 0.0
        %1153 = vmatprep.subr.mxu0 0.0
        %1154 = vmatpush1.msra.mxu0 0.0
        %1155 = vmatprep.subr.mxu0 0.0
        %1156 = vmatpush1.msra.mxu0 0.0
        %1157 = vmatprep.subr.mxu0 0.0
        %1158 = vmatpush1.msra.mxu0 0.0
        %1159 = vmatprep.subr.mxu0 0.0
        %1160 = vmatpush1.msra.mxu0 0.0
        %1161 = vmatprep.subr.mxu0 0.0
        %1162 = vmatpush1.msra.mxu0 0.0
        %1163 = vmatprep.subr.mxu0 0.0
        %1164 = vmatpush1.msra.mxu0 0.0
        %1165 = vmatprep.subr.mxu0 0.0
        %1166 = vmatpush1.msra.mxu0 %v300
        %1167 = vmatprep.subr.mxu0 0.0
        %1168 = vmatpush1.msra.mxu0 %v299
        %1169 = vmatprep.subr.mxu0 0.0
        %1170 = vmatpush1.msra.mxu0 %v298
        %1171 = vmatprep.subr.mxu0 0.0
        %1172 = vmatpush1.msra.mxu0 %v297
        %1173 = vmatprep.subr.mxu0 0.0
        %1174 = vmatpush2.msra.mxu0 0.0
        %1175 = vmatprep.subr.mxu0 0.0
        %1176 = vmatpush2.msra.mxu0 0.0
        %1177 = vmatprep.subr.mxu0 0.0
        %1178 = vmatpush2.msra.mxu0 0.0
        %1179 = vmatprep.subr.mxu0 0.0
        %1180 = vmatpush2.msra.mxu0 0.0
        %1181 = vmatprep.subr.mxu0 0.0
        %1182 = vmatpush2.msra.mxu0 0.0
        %1183 = vmatprep.subr.mxu0 0.0
        %1184 = vmatpush2.msra.mxu0 0.0
        %1185 = vmatprep.subr.mxu0 0.0
        %1186 = vmatpush2.msra.mxu0 0.0
        %1187 = vmatprep.subr.mxu0 0.0
        %1188 = vmatpush2.msra.mxu0 0.0
        %1189 = vmatprep.subr.mxu0 0.0
        %1190 = vmatpush2.msra.mxu0 0.0
        %1191 = vmatprep.subr.mxu0 0.0
        %1192 = vmatpush2.msra.mxu0 0.0
        %1193 = vmatprep.subr.mxu0 0.0
        %1194 = vmatpush2.msra.mxu0 0.0
        %1195 = vmatprep.subr.mxu0 0.0
        %1196 = vmatpush2.msra.mxu0 0.0
        %1197 = vmatprep.subr.mxu0 0.0
        %1198 = vmatpush2.msra.mxu0 0.0
        %1199 = vmatprep.subr.mxu0 0.0
        %1200 = vmatpush2.msra.mxu0 0.0
        %1201 = vmatprep.subr.mxu0 0.0
        %1202 = vmatpush2.msra.mxu0 0.0
        %1203 = vmatprep.subr.mxu0 0.0
        %1204 = vmatpush2.msra.mxu0 0.0
        %1205 = vmatprep.mubr.f32.mxu0 0.0
        %1206 = vmatmul.mubr.f32.gmra.mxu0 %v993
        %v1207 = vpop.f32.mrf.mxu0
        %v1208 = vadd.f32 0.0, %v1207
        %v1209 = vpop.f32.mrf.mxu0
        %1210 = vdwg.mxu0
        %v1211 = vadd.f32 %v439, %v1208
        %v1212 = vtanh.pop %v1211
        %v1214 = vsel %vm470, %v1212, 0
        %1216 = vmatprep.subr.mxu0 0.0
        %1217 = vmatpush1.msra.mxu0 0.0
        %1218 = vmatprep.subr.mxu0 0.0
        %1219 = vmatpush1.msra.mxu0 0.0
        %1220 = vmatprep.subr.mxu0 0.0
        %1221 = vmatpush1.msra.mxu0 0.0
        %1222 = vmatprep.subr.mxu0 0.0
        %1223 = vmatpush1.msra.mxu0 0.0
        %1224 = vmatprep.subr.mxu0 0.0
        %1225 = vmatpush1.msra.mxu0 0.0
        %1226 = vmatprep.subr.mxu0 0.0
        %1227 = vmatpush1.msra.mxu0 0.0
        %1228 = vmatprep.subr.mxu0 0.0
        %1229 = vmatpush1.msra.mxu0 0.0
        %1230 = vmatprep.subr.mxu0 0.0
        %1231 = vmatpush1.msra.mxu0 0.0
        %1232 = vmatprep.subr.mxu0 0.0
        %1233 = vmatpush1.msra.mxu0 0.0
        %1234 = vmatprep.subr.mxu0 0.0
        %1235 = vmatpush1.msra.mxu0 0.0
        %1236 = vmatprep.subr.mxu0 0.0
        %1237 = vmatpush1.msra.mxu0 0.0
        %1238 = vmatprep.subr.mxu0 0.0
        %1239 = vmatpush1.msra.mxu0 0.0
        %1240 = vmatprep.subr.mxu0 0.0
        %1241 = vmatpush1.msra.mxu0 %v304
        %1242 = vmatprep.subr.mxu0 0.0
        %1243 = vmatpush1.msra.mxu0 %v303
        %1244 = vmatprep.subr.mxu0 0.0
        %1245 = vmatpush1.msra.mxu0 %v302
        %1246 = vmatprep.subr.mxu0 0.0
        %1247 = vmatpush1.msra.mxu0 %v301
        %1248 = vmatprep.subr.mxu0 0.0
        %1249 = vmatpush2.msra.mxu0 0.0
        %1250 = vmatprep.subr.mxu0 0.0
        %1251 = vmatpush2.msra.mxu0 0.0
        %1252 = vmatprep.subr.mxu0 0.0
        %1253 = vmatpush2.msra.mxu0 0.0
        %1254 = vmatprep.subr.mxu0 0.0
        %1255 = vmatpush2.msra.mxu0 0.0
        %1256 = vmatprep.subr.mxu0 0.0
        %1257 = vmatpush2.msra.mxu0 0.0
        %1258 = vmatprep.subr.mxu0 0.0
        %1259 = vmatpush2.msra.mxu0 0.0
        %1260 = vmatprep.subr.mxu0 0.0
        %1261 = vmatpush2.msra.mxu0 0.0
        %1262 = vmatprep.subr.mxu0 0.0
        %1263 = vmatpush2.msra.mxu0 0.0
        %1264 = vmatprep.subr.mxu0 0.0
        %1265 = vmatpush2.msra.mxu0 0.0
        %1266 = vmatprep.subr.mxu0 0.0
        %1267 = vmatpush2.msra.mxu0 0.0
        %1268 = vmatprep.subr.mxu0 0.0
        %1269 = vmatpush2.msra.mxu0 0.0
        %1270 = vmatprep.subr.mxu0 0.0
        %1271 = vmatpush2.msra.mxu0 0.0
        %1272 = vmatprep.subr.mxu0 0.0
        %1273 = vmatpush2.msra.mxu0 0.0
        %1274 = vmatprep.subr.mxu0 0.0
        %1275 = vmatpush2.msra.mxu0 0.0
        %1276 = vmatprep.subr.mxu0 0.0
        %1277 = vmatpush2.msra.mxu0 0.0
        %1278 = vmatprep.subr.mxu0 0.0
        %1279 = vmatpush2.msra.mxu0 0.0
        %1280 = vmatprep.mubr.f32.mxu0 0.0
        %1281 = vmatmul.mubr.f32.gmra.mxu0 %v1214
        %v1282 = vpop.f32.mrf.mxu0
        %v1283 = vadd.f32 0.0, %v1282
        %v1284 = vpop.f32.mrf.mxu0
        %1285 = vdwg.mxu0
        %v1286 = vadd.f32 %v622, %v1283
        %v1288 = vsel %vm470, %v1140, 0
        %1290 = vmatprep.subr.mxu0 0.0
        %1291 = vmatpush1.msra.mxu0 0.0
        %1292 = vmatprep.subr.mxu0 0.0
        %1293 = vmatpush1.msra.mxu0 0.0
        %1294 = vmatprep.subr.mxu0 0.0
        %1295 = vmatpush1.msra.mxu0 0.0
        %1296 = vmatprep.subr.mxu0 0.0
        %1297 = vmatpush1.msra.mxu0 0.0
        %1298 = vmatprep.subr.mxu0 0.0
        %1299 = vmatpush1.msra.mxu0 0.0
        %1300 = vmatprep.subr.mxu0 0.0
        %1301 = vmatpush1.msra.mxu0 0.0
        %1302 = vmatprep.subr.mxu0 0.0
        %1303 = vmatpush1.msra.mxu0 0.0
        %1304 = vmatprep.subr.mxu0 0.0
        %1305 = vmatpush1.msra.mxu0 0.0
        %1306 = vmatprep.subr.mxu0 0.0
        %1307 = vmatpush1.msra.mxu0 0.0
        %1308 = vmatprep.subr.mxu0 0.0
        %1309 = vmatpush1.msra.mxu0 0.0
        %1310 = vmatprep.subr.mxu0 0.0
        %1311 = vmatpush1.msra.mxu0 0.0
        %1312 = vmatprep.subr.mxu0 0.0
        %1313 = vmatpush1.msra.mxu0 0.0
        %1314 = vmatprep.subr.mxu0 0.0
        %1315 = vmatpush1.msra.mxu0 %v308
        %1316 = vmatprep.subr.mxu0 0.0
        %1317 = vmatpush1.msra.mxu0 %v307
        %1318 = vmatprep.subr.mxu0 0.0
        %1319 = vmatpush1.msra.mxu0 %v306
        %1320 = vmatprep.subr.mxu0 0.0
        %1321 = vmatpush1.msra.mxu0 %v305
        %1322 = vmatprep.subr.mxu0 0.0
        %1323 = vmatpush2.msra.mxu0 0.0
        %1324 = vmatprep.subr.mxu0 0.0
        %1325 = vmatpush2.msra.mxu0 0.0
        %1326 = vmatprep.subr.mxu0 0.0
        %1327 = vmatpush2.msra.mxu0 0.0
        %1328 = vmatprep.subr.mxu0 0.0
        %1329 = vmatpush2.msra.mxu0 0.0
        %1330 = vmatprep.subr.mxu0 0.0
        %1331 = vmatpush2.msra.mxu0 0.0
        %1332 = vmatprep.subr.mxu0 0.0
        %1333 = vmatpush2.msra.mxu0 0.0
        %1334 = vmatprep.subr.mxu0 0.0
        %1335 = vmatpush2.msra.mxu0 0.0
        %1336 = vmatprep.subr.mxu0 0.0
        %1337 = vmatpush2.msra.mxu0 0.0
        %1338 = vmatprep.subr.mxu0 0.0
        %1339 = vmatpush2.msra.mxu0 0.0
        %1340 = vmatprep.subr.mxu0 0.0
        %1341 = vmatpush2.msra.mxu0 0.0
        %1342 = vmatprep.subr.mxu0 0.0
        %1343 = vmatpush2.msra.mxu0 0.0
        %1344 = vmatprep.subr.mxu0 0.0
        %1345 = vmatpush2.msra.mxu0 0.0
        %1346 = vmatprep.subr.mxu0 0.0
        %1347 = vmatpush2.msra.mxu0 0.0
        %1348 = vmatprep.subr.mxu0 0.0
        %1349 = vmatpush2.msra.mxu0 0.0
        %1350 = vmatprep.subr.mxu0 0.0
        %1351 = vmatpush2.msra.mxu0 0.0
        %1352 = vmatprep.subr.mxu0 0.0
        %1353 = vmatpush2.msra.mxu0 0.0
        %1354 = vmatprep.mubr.f32.mxu0 0.0
        %1355 = vmatmul.mubr.f32.gmra.mxu0 %v1288
        %v1356 = vpop.f32.mrf.mxu0
        %v1357 = vadd.f32 0.0, %v1356
        %v1358 = vpop.f32.mrf.mxu0
        %1359 = vdwg.mxu0
        %v1360 = vadd.f32 %v1286, %v1357
        %v1361 = vtanh.pop %v1360
        %1362 = vmatprep.subr.mxu0 0.0
        %1363 = vmatpush1.msra.mxu0 0.0
        %1364 = vmatprep.subr.mxu0 0.0
        %1365 = vmatpush1.msra.mxu0 0.0
        %1366 = vmatprep.subr.mxu0 0.0
        %1367 = vmatpush1.msra.mxu0 0.0
        %1368 = vmatprep.subr.mxu0 0.0
        %1369 = vmatpush1.msra.mxu0 0.0
        %1370 = vmatprep.subr.mxu0 0.0
        %1371 = vmatpush1.msra.mxu0 0.0
        %1372 = vmatprep.subr.mxu0 0.0
        %1373 = vmatpush1.msra.mxu0 0.0
        %1374 = vmatprep.subr.mxu0 0.0
        %1375 = vmatpush1.msra.mxu0 0.0
        %1376 = vmatprep.subr.mxu0 0.0
        %1377 = vmatpush1.msra.mxu0 0.0
        %1378 = vmatprep.subr.mxu0 0.0
        %1379 = vmatpush1.msra.mxu0 0.0
        %1380 = vmatprep.subr.mxu0 0.0
        %1381 = vmatpush1.msra.mxu0 0.0
        %1382 = vmatprep.subr.mxu0 0.0
        %1383 = vmatpush1.msra.mxu0 0.0
        %1384 = vmatprep.subr.mxu0 0.0
        %1385 = vmatpush1.msra.mxu0 0.0
        %1386 = vmatprep.subr.mxu0 0.0
        %1387 = vmatpush1.msra.mxu0 %v300
        %1388 = vmatprep.subr.mxu0 0.0
        %1389 = vmatpush1.msra.mxu0 %v299
        %1390 = vmatprep.subr.mxu0 0.0
        %1391 = vmatpush1.msra.mxu0 %v298
        %1392 = vmatprep.subr.mxu0 0.0
        %1393 = vmatpush1.msra.mxu0 %v297
        %1394 = vmatprep.subr.mxu0 0.0
        %1395 = vmatpush2.msra.mxu0 0.0
        %1396 = vmatprep.subr.mxu0 0.0
        %1397 = vmatpush2.msra.mxu0 0.0
        %1398 = vmatprep.subr.mxu0 0.0
        %1399 = vmatpush2.msra.mxu0 0.0
        %1400 = vmatprep.subr.mxu0 0.0
        %1401 = vmatpush2.msra.mxu0 0.0
        %1402 = vmatprep.subr.mxu0 0.0
        %1403 = vmatpush2.msra.mxu0 0.0
        %1404 = vmatprep.subr.mxu0 0.0
        %1405 = vmatpush2.msra.mxu0 0.0
        %1406 = vmatprep.subr.mxu0 0.0
        %1407 = vmatpush2.msra.mxu0 0.0
        %1408 = vmatprep.subr.mxu0 0.0
        %1409 = vmatpush2.msra.mxu0 0.0
        %1410 = vmatprep.subr.mxu0 0.0
        %1411 = vmatpush2.msra.mxu0 0.0
        %1412 = vmatprep.subr.mxu0 0.0
        %1413 = vmatpush2.msra.mxu0 0.0
        %1414 = vmatprep.subr.mxu0 0.0
        %1415 = vmatpush2.msra.mxu0 0.0
        %1416 = vmatprep.subr.mxu0 0.0
        %1417 = vmatpush2.msra.mxu0 0.0
        %1418 = vmatprep.subr.mxu0 0.0
        %1419 = vmatpush2.msra.mxu0 0.0
        %1420 = vmatprep.subr.mxu0 0.0
        %1421 = vmatpush2.msra.mxu0 0.0
        %1422 = vmatprep.subr.mxu0 0.0
        %1423 = vmatpush2.msra.mxu0 0.0
        %1424 = vmatprep.subr.mxu0 0.0
        %1425 = vmatpush2.msra.mxu0 0.0
        %1426 = vmatprep.mubr.f32.mxu0 0.0
        %1427 = vmatmul.mubr.f32.gmra.mxu0 %v1214
        %v1428 = vpop.f32.mrf.mxu0
        %v1429 = vadd.f32 0.0, %v1428
        %v1430 = vpop.f32.mrf.mxu0
        %1431 = vdwg.mxu0
        %v1432 = vadd.f32 %v444, %v1429
        %v1433 = vtanh.pop %v1432
        %v1435 = vsel %vm470, %v1433, 0
        %1437 = vmatprep.subr.mxu0 0.0
        %1438 = vmatpush1.msra.mxu0 0.0
        %1439 = vmatprep.subr.mxu0 0.0
        %1440 = vmatpush1.msra.mxu0 0.0
        %1441 = vmatprep.subr.mxu0 0.0
        %1442 = vmatpush1.msra.mxu0 0.0
        %1443 = vmatprep.subr.mxu0 0.0
        %1444 = vmatpush1.msra.mxu0 0.0
        %1445 = vmatprep.subr.mxu0 0.0
        %1446 = vmatpush1.msra.mxu0 0.0
        %1447 = vmatprep.subr.mxu0 0.0
        %1448 = vmatpush1.msra.mxu0 0.0
        %1449 = vmatprep.subr.mxu0 0.0
        %1450 = vmatpush1.msra.mxu0 0.0
        %1451 = vmatprep.subr.mxu0 0.0
        %1452 = vmatpush1.msra.mxu0 0.0
        %1453 = vmatprep.subr.mxu0 0.0
        %1454 = vmatpush1.msra.mxu0 0.0
        %1455 = vmatprep.subr.mxu0 0.0
        %1456 = vmatpush1.msra.mxu0 0.0
        %1457 = vmatprep.subr.mxu0 0.0
        %1458 = vmatpush1.msra.mxu0 0.0
        %1459 = vmatprep.subr.mxu0 0.0
        %1460 = vmatpush1.msra.mxu0 0.0
        %1461 = vmatprep.subr.mxu0 0.0
        %1462 = vmatpush1.msra.mxu0 %v304
        %1463 = vmatprep.subr.mxu0 0.0
        %1464 = vmatpush1.msra.mxu0 %v303
        %1465 = vmatprep.subr.mxu0 0.0
        %1466 = vmatpush1.msra.mxu0 %v302
        %1467 = vmatprep.subr.mxu0 0.0
        %1468 = vmatpush1.msra.mxu0 %v301
        %1469 = vmatprep.subr.mxu0 0.0
        %1470 = vmatpush2.msra.mxu0 0.0
        %1471 = vmatprep.subr.mxu0 0.0
        %1472 = vmatpush2.msra.mxu0 0.0
        %1473 = vmatprep.subr.mxu0 0.0
        %1474 = vmatpush2.msra.mxu0 0.0
        %1475 = vmatprep.subr.mxu0 0.0
        %1476 = vmatpush2.msra.mxu0 0.0
        %1477 = vmatprep.subr.mxu0 0.0
        %1478 = vmatpush2.msra.mxu0 0.0
        %1479 = vmatprep.subr.mxu0 0.0
        %1480 = vmatpush2.msra.mxu0 0.0
        %1481 = vmatprep.subr.mxu0 0.0
        %1482 = vmatpush2.msra.mxu0 0.0
        %1483 = vmatprep.subr.mxu0 0.0
        %1484 = vmatpush2.msra.mxu0 0.0
        %1485 = vmatprep.subr.mxu0 0.0
        %1486 = vmatpush2.msra.mxu0 0.0
        %1487 = vmatprep.subr.mxu0 0.0
        %1488 = vmatpush2.msra.mxu0 0.0
        %1489 = vmatprep.subr.mxu0 0.0
        %1490 = vmatpush2.msra.mxu0 0.0
        %1491 = vmatprep.subr.mxu0 0.0
        %1492 = vmatpush2.msra.mxu0 0.0
        %1493 = vmatprep.subr.mxu0 0.0
        %1494 = vmatpush2.msra.mxu0 0.0
        %1495 = vmatprep.subr.mxu0 0.0
        %1496 = vmatpush2.msra.mxu0 0.0
        %1497 = vmatprep.subr.mxu0 0.0
        %1498 = vmatpush2.msra.mxu0 0.0
        %1499 = vmatprep.subr.mxu0 0.0
        %1500 = vmatpush2.msra.mxu0 0.0
        %1501 = vmatprep.mubr.f32.mxu0 0.0
        %1502 = vmatmul.mubr.f32.gmra.mxu0 %v1435
        %v1503 = vpop.f32.mrf.mxu0
        %v1504 = vadd.f32 0.0, %v1503
        %v1505 = vpop.f32.mrf.mxu0
        %1506 = vdwg.mxu0
        %v1507 = vadd.f32 %v622, %v1504
        %v1509 = vsel %vm470, %v1361, 0
        %1511 = vmatprep.subr.mxu0 0.0
        %1512 = vmatpush1.msra.mxu0 0.0
        %1513 = vmatprep.subr.mxu0 0.0
        %1514 = vmatpush1.msra.mxu0 0.0
        %1515 = vmatprep.subr.mxu0 0.0
        %1516 = vmatpush1.msra.mxu0 0.0
        %1517 = vmatprep.subr.mxu0 0.0
        %1518 = vmatpush1.msra.mxu0 0.0
        %1519 = vmatprep.subr.mxu0 0.0
        %1520 = vmatpush1.msra.mxu0 0.0
        %1521 = vmatprep.subr.mxu0 0.0
        %1522 = vmatpush1.msra.mxu0 0.0
        %1523 = vmatprep.subr.mxu0 0.0
        %1524 = vmatpush1.msra.mxu0 0.0
        %1525 = vmatprep.subr.mxu0 0.0
        %1526 = vmatpush1.msra.mxu0 0.0
        %1527 = vmatprep.subr.mxu0 0.0
        %1528 = vmatpush1.msra.mxu0 0.0
        %1529 = vmatprep.subr.mxu0 0.0
        %1530 = vmatpush1.msra.mxu0 0.0
        %1531 = vmatprep.subr.mxu0 0.0
        %1532 = vmatpush1.msra.mxu0 0.0
        %1533 = vmatprep.subr.mxu0 0.0
        %1534 = vmatpush1.msra.mxu0 0.0
        %1535 = vmatprep.subr.mxu0 0.0
        %1536 = vmatpush1.msra.mxu0 %v308
        %1537 = vmatprep.subr.mxu0 0.0
        %1538 = vmatpush1.msra.mxu0 %v307
        %1539 = vmatprep.subr.mxu0 0.0
        %1540 = vmatpush1.msra.mxu0 %v306
        %1541 = vmatprep.subr.mxu0 0.0
        %1542 = vmatpush1.msra.mxu0 %v305
        %1543 = vmatprep.subr.mxu0 0.0
        %1544 = vmatpush2.msra.mxu0 0.0
        %1545 = vmatprep.subr.mxu0 0.0
        %1546 = vmatpush2.msra.mxu0 0.0
        %1547 = vmatprep.subr.mxu0 0.0
        %1548 = vmatpush2.msra.mxu0 0.0
        %1549 = vmatprep.subr.mxu0 0.0
        %1550 = vmatpush2.msra.mxu0 0.0
        %1551 = vmatprep.subr.mxu0 0.0
        %1552 = vmatpush2.msra.mxu0 0.0
        %1553 = vmatprep.subr.mxu0 0.0
        %1554 = vmatpush2.msra.mxu0 0.0
        %1555 = vmatprep.subr.mxu0 0.0
        %1556 = vmatpush2.msra.mxu0 0.0
        %1557 = vmatprep.subr.mxu0 0.0
        %1558 = vmatpush2.msra.mxu0 0.0
        %1559 = vmatprep.subr.mxu0 0.0
        %1560 = vmatpush2.msra.mxu0 0.0
        %1561 = vmatprep.subr.mxu0 0.0
        %1562 = vmatpush2.msra.mxu0 0.0
        %1563 = vmatprep.subr.mxu0 0.0
        %1564 = vmatpush2.msra.mxu0 0.0
        %1565 = vmatprep.subr.mxu0 0.0
        %1566 = vmatpush2.msra.mxu0 0.0
        %1567 = vmatprep.subr.mxu0 0.0
        %1568 = vmatpush2.msra.mxu0 0.0
        %1569 = vmatprep.subr.mxu0 0.0
        %1570 = vmatpush2.msra.mxu0 0.0
        %1571 = vmatprep.subr.mxu0 0.0
        %1572 = vmatpush2.msra.mxu0 0.0
        %1573 = vmatprep.subr.mxu0 0.0
        %1574 = vmatpush2.msra.mxu0 0.0
        %1575 = vmatprep.mubr.f32.mxu0 0.0
        %1576 = vmatmul.mubr.f32.gmra.mxu0 %v1509
        %v1577 = vpop.f32.mrf.mxu0
        %v1578 = vadd.f32 0.0, %v1577
        %v1579 = vpop.f32.mrf.mxu0
        %1580 = vdwg.mxu0
        %v1581 = vadd.f32 %v1507, %v1578
        %v1582 = vtanh.pop %v1581
        %1583 = vmatprep.subr.mxu0 0.0
        %1584 = vmatpush1.msra.mxu0 0.0
        %1585 = vmatprep.subr.mxu0 0.0
        %1586 = vmatpush1.msra.mxu0 0.0
        %1587 = vmatprep.subr.mxu0 0.0
        %1588 = vmatpush1.msra.mxu0 0.0
        %1589 = vmatprep.subr.mxu0 0.0
        %1590 = vmatpush1.msra.mxu0 0.0
        %1591 = vmatprep.subr.mxu0 0.0
        %1592 = vmatpush1.msra.mxu0 0.0
        %1593 = vmatprep.subr.mxu0 0.0
        %1594 = vmatpush1.msra.mxu0 0.0
        %1595 = vmatprep.subr.mxu0 0.0
        %1596 = vmatpush1.msra.mxu0 0.0
        %1597 = vmatprep.subr.mxu0 0.0
        %1598 = vmatpush1.msra.mxu0 0.0
        %1599 = vmatprep.subr.mxu0 0.0
        %1600 = vmatpush1.msra.mxu0 0.0
        %1601 = vmatprep.subr.mxu0 0.0
        %1602 = vmatpush1.msra.mxu0 0.0
        %1603 = vmatprep.subr.mxu0 0.0
        %1604 = vmatpush1.msra.mxu0 0.0
        %1605 = vmatprep.subr.mxu0 0.0
        %1606 = vmatpush1.msra.mxu0 0.0
        %1607 = vmatprep.subr.mxu0 0.0
        %1608 = vmatpush1.msra.mxu0 %v300
        %1609 = vmatprep.subr.mxu0 0.0
        %1610 = vmatpush1.msra.mxu0 %v299
        %1611 = vmatprep.subr.mxu0 0.0
        %1612 = vmatpush1.msra.mxu0 %v298
        %1613 = vmatprep.subr.mxu0 0.0
        %1614 = vmatpush1.msra.mxu0 %v297
        %1615 = vmatprep.subr.mxu0 0.0
        %1616 = vmatpush2.msra.mxu0 0.0
        %1617 = vmatprep.subr.mxu0 0.0
        %1618 = vmatpush2.msra.mxu0 0.0
        %1619 = vmatprep.subr.mxu0 0.0
        %1620 = vmatpush2.msra.mxu0 0.0
        %1621 = vmatprep.subr.mxu0 0.0
        %1622 = vmatpush2.msra.mxu0 0.0
        %1623 = vmatprep.subr.mxu0 0.0
        %1624 = vmatpush2.msra.mxu0 0.0
        %1625 = vmatprep.subr.mxu0 0.0
        %1626 = vmatpush2.msra.mxu0 0.0
        %1627 = vmatprep.subr.mxu0 0.0
        %1628 = vmatpush2.msra.mxu0 0.0
        %1629 = vmatprep.subr.mxu0 0.0
        %1630 = vmatpush2.msra.mxu0 0.0
        %1631 = vmatprep.subr.mxu0 0.0
        %1632 = vmatpush2.msra.mxu0 0.0
        %1633 = vmatprep.subr.mxu0 0.0
        %1634 = vmatpush2.msra.mxu0 0.0
        %1635 = vmatprep.subr.mxu0 0.0
        %1636 = vmatpush2.msra.mxu0 0.0
        %1637 = vmatprep.subr.mxu0 0.0
        %1638 = vmatpush2.msra.mxu0 0.0
        %1639 = vmatprep.subr.mxu0 0.0
        %1640 = vmatpush2.msra.mxu0 0.0
        %1641 = vmatprep.subr.mxu0 0.0
        %1642 = vmatpush2.msra.mxu0 0.0
        %1643 = vmatprep.subr.mxu0 0.0
        %1644 = vmatpush2.msra.mxu0 0.0
        %1645 = vmatprep.subr.mxu0 0.0
        %1646 = vmatpush2.msra.mxu0 0.0
        %1647 = vmatprep.mubr.f32.mxu0 0.0
        %1648 = vmatmul.mubr.f32.gmra.mxu0 %v1435
        %v1649 = vpop.f32.mrf.mxu0
        %v1650 = vadd.f32 0.0, %v1649
        %v1651 = vpop.f32.mrf.mxu0
        %1652 = vdwg.mxu0
        %v1653 = vadd.f32 %v449, %v1650
        %v1654 = vtanh.pop %v1653
        %v1656 = vsel %vm470, %v1654, 0
        %1658 = vmatprep.subr.mxu0 0.0
        %1659 = vmatpush1.msra.mxu0 0.0
        %1660 = vmatprep.subr.mxu0 0.0
        %1661 = vmatpush1.msra.mxu0 0.0
        %1662 = vmatprep.subr.mxu0 0.0
        %1663 = vmatpush1.msra.mxu0 0.0
        %1664 = vmatprep.subr.mxu0 0.0
        %1665 = vmatpush1.msra.mxu0 0.0
        %1666 = vmatprep.subr.mxu0 0.0
        %1667 = vmatpush1.msra.mxu0 0.0
        %1668 = vmatprep.subr.mxu0 0.0
        %1669 = vmatpush1.msra.mxu0 0.0
        %1670 = vmatprep.subr.mxu0 0.0
        %1671 = vmatpush1.msra.mxu0 0.0
        %1672 = vmatprep.subr.mxu0 0.0
        %1673 = vmatpush1.msra.mxu0 0.0
        %1674 = vmatprep.subr.mxu0 0.0
        %1675 = vmatpush1.msra.mxu0 0.0
        %1676 = vmatprep.subr.mxu0 0.0
        %1677 = vmatpush1.msra.mxu0 0.0
        %1678 = vmatprep.subr.mxu0 0.0
        %1679 = vmatpush1.msra.mxu0 0.0
        %1680 = vmatprep.subr.mxu0 0.0
        %1681 = vmatpush1.msra.mxu0 0.0
        %1682 = vmatprep.subr.mxu0 0.0
        %1683 = vmatpush1.msra.mxu0 %v304
        %1684 = vmatprep.subr.mxu0 0.0
        %1685 = vmatpush1.msra.mxu0 %v303
        %1686 = vmatprep.subr.mxu0 0.0
        %1687 = vmatpush1.msra.mxu0 %v302
        %1688 = vmatprep.subr.mxu0 0.0
        %1689 = vmatpush1.msra.mxu0 %v301
        %1690 = vmatprep.subr.mxu0 0.0
        %1691 = vmatpush2.msra.mxu0 0.0
        %1692 = vmatprep.subr.mxu0 0.0
        %1693 = vmatpush2.msra.mxu0 0.0
        %1694 = vmatprep.subr.mxu0 0.0
        %1695 = vmatpush2.msra.mxu0 0.0
        %1696 = vmatprep.subr.mxu0 0.0
        %1697 = vmatpush2.msra.mxu0 0.0
        %1698 = vmatprep.subr.mxu0 0.0
        %1699 = vmatpush2.msra.mxu0 0.0
        %1700 = vmatprep.subr.mxu0 0.0
        %1701 = vmatpush2.msra.mxu0 0.0
        %1702 = vmatprep.subr.mxu0 0.0
        %1703 = vmatpush2.msra.mxu0 0.0
        %1704 = vmatprep.subr.mxu0 0.0
        %1705 = vmatpush2.msra.mxu0 0.0
        %1706 = vmatprep.subr.mxu0 0.0
        %1707 = vmatpush2.msra.mxu0 0.0
        %1708 = vmatprep.subr.mxu0 0.0
        %1709 = vmatpush2.msra.mxu0 0.0
        %1710 = vmatprep.subr.mxu0 0.0
        %1711 = vmatpush2.msra.mxu0 0.0
        %1712 = vmatprep.subr.mxu0 0.0
        %1713 = vmatpush2.msra.mxu0 0.0
        %1714 = vmatprep.subr.mxu0 0.0
        %1715 = vmatpush2.msra.mxu0 0.0
        %1716 = vmatprep.subr.mxu0 0.0
        %1717 = vmatpush2.msra.mxu0 0.0
        %1718 = vmatprep.subr.mxu0 0.0
        %1719 = vmatpush2.msra.mxu0 0.0
        %1720 = vmatprep.subr.mxu0 0.0
        %1721 = vmatpush2.msra.mxu0 0.0
        %1722 = vmatprep.mubr.f32.mxu0 0.0
        %1723 = vmatmul.mubr.f32.gmra.mxu0 %v1656
        %v1724 = vpop.f32.mrf.mxu0
        %v1725 = vadd.f32 0.0, %v1724
        %v1726 = vpop.f32.mrf.mxu0
        %1727 = vdwg.mxu0
        %v1728 = vadd.f32 %v622, %v1725
        %v1730 = vsel %vm470, %v1582, 0
        %1732 = vmatprep.subr.mxu0 0.0
        %1733 = vmatpush1.msra.mxu0 0.0
        %1734 = vmatprep.subr.mxu0 0.0
        %1735 = vmatpush1.msra.mxu0 0.0
        %1736 = vmatprep.subr.mxu0 0.0
        %1737 = vmatpush1.msra.mxu0 0.0
        %1738 = vmatprep.subr.mxu0 0.0
        %1739 = vmatpush1.msra.mxu0 0.0
        %1740 = vmatprep.subr.mxu0 0.0
        %1741 = vmatpush1.msra.mxu0 0.0
        %1742 = vmatprep.subr.mxu0 0.0
        %1743 = vmatpush1.msra.mxu0 0.0
        %1744 = vmatprep.subr.mxu0 0.0
        %1745 = vmatpush1.msra.mxu0 0.0
        %1746 = vmatprep.subr.mxu0 0.0
        %1747 = vmatpush1.msra.mxu0 0.0
        %1748 = vmatprep.subr.mxu0 0.0
        %1749 = vmatpush1.msra.mxu0 0.0
        %1750 = vmatprep.subr.mxu0 0.0
        %1751 = vmatpush1.msra.mxu0 0.0
        %1752 = vmatprep.subr.mxu0 0.0
        %1753 = vmatpush1.msra.mxu0 0.0
        %1754 = vmatprep.subr.mxu0 0.0
        %1755 = vmatpush1.msra.mxu0 0.0
        %1756 = vmatprep.subr.mxu0 0.0
        %1757 = vmatpush1.msra.mxu0 %v308
        %1758 = vmatprep.subr.mxu0 0.0
        %1759 = vmatpush1.msra.mxu0 %v307
        %1760 = vmatprep.subr.mxu0 0.0
        %1761 = vmatpush1.msra.mxu0 %v306
        %1762 = vmatprep.subr.mxu0 0.0
        %1763 = vmatpush1.msra.mxu0 %v305
        %1764 = vmatprep.subr.mxu0 0.0
        %1765 = vmatpush2.msra.mxu0 0.0
        %1766 = vmatprep.subr.mxu0 0.0
        %1767 = vmatpush2.msra.mxu0 0.0
        %1768 = vmatprep.subr.mxu0 0.0
        %1769 = vmatpush2.msra.mxu0 0.0
        %1770 = vmatprep.subr.mxu0 0.0
        %1771 = vmatpush2.msra.mxu0 0.0
        %1772 = vmatprep.subr.mxu0 0.0
        %1773 = vmatpush2.msra.mxu0 0.0
        %1774 = vmatprep.subr.mxu0 0.0
        %1775 = vmatpush2.msra.mxu0 0.0
        %1776 = vmatprep.subr.mxu0 0.0
        %1777 = vmatpush2.msra.mxu0 0.0
        %1778 = vmatprep.subr.mxu0 0.0
        %1779 = vmatpush2.msra.mxu0 0.0
        %1780 = vmatprep.subr.mxu0 0.0
        %1781 = vmatpush2.msra.mxu0 0.0
        %1782 = vmatprep.subr.mxu0 0.0
        %1783 = vmatpush2.msra.mxu0 0.0
        %1784 = vmatprep.subr.mxu0 0.0
        %1785 = vmatpush2.msra.mxu0 0.0
        %1786 = vmatprep.subr.mxu0 0.0
        %1787 = vmatpush2.msra.mxu0 0.0
        %1788 = vmatprep.subr.mxu0 0.0
        %1789 = vmatpush2.msra.mxu0 0.0
        %1790 = vmatprep.subr.mxu0 0.0
        %1791 = vmatpush2.msra.mxu0 0.0
        %1792 = vmatprep.subr.mxu0 0.0
        %1793 = vmatpush2.msra.mxu0 0.0
        %1794 = vmatprep.subr.mxu0 0.0
        %1795 = vmatpush2.msra.mxu0 0.0
        %1796 = vmatprep.mubr.f32.mxu0 0.0
        %1797 = vmatmul.mubr.f32.gmra.mxu0 %v1730
        %v1798 = vpop.f32.mrf.mxu0
        %v1799 = vadd.f32 0.0, %v1798
        %v1800 = vpop.f32.mrf.mxu0
        %1801 = vdwg.mxu0
        %v1802 = vadd.f32 %v1728, %v1799
        %v1803 = vtanh.pop %v1802
        %1804 = vmatprep.subr.mxu0 0.0
        %1805 = vmatpush1.msra.mxu0 0.0
        %1806 = vmatprep.subr.mxu0 0.0
        %1807 = vmatpush1.msra.mxu0 0.0
        %1808 = vmatprep.subr.mxu0 0.0
        %1809 = vmatpush1.msra.mxu0 0.0
        %1810 = vmatprep.subr.mxu0 0.0
        %1811 = vmatpush1.msra.mxu0 0.0
        %1812 = vmatprep.subr.mxu0 0.0
        %1813 = vmatpush1.msra.mxu0 0.0
        %1814 = vmatprep.subr.mxu0 0.0
        %1815 = vmatpush1.msra.mxu0 0.0
        %1816 = vmatprep.subr.mxu0 0.0
        %1817 = vmatpush1.msra.mxu0 0.0
        %1818 = vmatprep.subr.mxu0 0.0
        %1819 = vmatpush1.msra.mxu0 0.0
        %1820 = vmatprep.subr.mxu0 0.0
        %1821 = vmatpush1.msra.mxu0 0.0
        %1822 = vmatprep.subr.mxu0 0.0
        %1823 = vmatpush1.msra.mxu0 0.0
        %1824 = vmatprep.subr.mxu0 0.0
        %1825 = vmatpush1.msra.mxu0 0.0
        %1826 = vmatprep.subr.mxu0 0.0
        %1827 = vmatpush1.msra.mxu0 0.0
        %1828 = vmatprep.subr.mxu0 0.0
        %1829 = vmatpush1.msra.mxu0 %v300
        %1830 = vmatprep.subr.mxu0 0.0
        %1831 = vmatpush1.msra.mxu0 %v299
        %1832 = vmatprep.subr.mxu0 0.0
        %1833 = vmatpush1.msra.mxu0 %v298
        %1834 = vmatprep.subr.mxu0 0.0
        %1835 = vmatpush1.msra.mxu0 %v297
        %1836 = vmatprep.subr.mxu0 0.0
        %1837 = vmatpush2.msra.mxu0 0.0
        %1838 = vmatprep.subr.mxu0 0.0
        %1839 = vmatpush2.msra.mxu0 0.0
        %1840 = vmatprep.subr.mxu0 0.0
        %1841 = vmatpush2.msra.mxu0 0.0
        %1842 = vmatprep.subr.mxu0 0.0
        %1843 = vmatpush2.msra.mxu0 0.0
        %1844 = vmatprep.subr.mxu0 0.0
        %1845 = vmatpush2.msra.mxu0 0.0
        %1846 = vmatprep.subr.mxu0 0.0
        %1847 = vmatpush2.msra.mxu0 0.0
        %1848 = vmatprep.subr.mxu0 0.0
        %1849 = vmatpush2.msra.mxu0 0.0
        %1850 = vmatprep.subr.mxu0 0.0
        %1851 = vmatpush2.msra.mxu0 0.0
        %1852 = vmatprep.subr.mxu0 0.0
        %1853 = vmatpush2.msra.mxu0 0.0
        %1854 = vmatprep.subr.mxu0 0.0
        %1855 = vmatpush2.msra.mxu0 0.0
        %1856 = vmatprep.subr.mxu0 0.0
        %1857 = vmatpush2.msra.mxu0 0.0
        %1858 = vmatprep.subr.mxu0 0.0
        %1859 = vmatpush2.msra.mxu0 0.0
        %1860 = vmatprep.subr.mxu0 0.0
        %1861 = vmatpush2.msra.mxu0 0.0
        %1862 = vmatprep.subr.mxu0 0.0
        %1863 = vmatpush2.msra.mxu0 0.0
        %1864 = vmatprep.subr.mxu0 0.0
        %1865 = vmatpush2.msra.mxu0 0.0
        %1866 = vmatprep.subr.mxu0 0.0
        %1867 = vmatpush2.msra.mxu0 0.0
        %1868 = vmatprep.mubr.f32.mxu0 0.0
        %1869 = vmatmul.mubr.f32.gmra.mxu0 %v1656
        %v1870 = vpop.f32.mrf.mxu0
        %v1871 = vadd.f32 0.0, %v1870
        %v1872 = vpop.f32.mrf.mxu0
        %1873 = vdwg.mxu0
        %v1874 = vadd.f32 %v454, %v1871
        %v1875 = vtanh.pop %v1874
        %v1877 = vsel %vm470, %v1875, 0
        %1879 = vmatprep.subr.mxu0 0.0
        %1880 = vmatpush1.msra.mxu0 0.0
        %1881 = vmatprep.subr.mxu0 0.0
        %1882 = vmatpush1.msra.mxu0 0.0
        %1883 = vmatprep.subr.mxu0 0.0
        %1884 = vmatpush1.msra.mxu0 0.0
        %1885 = vmatprep.subr.mxu0 0.0
        %1886 = vmatpush1.msra.mxu0 0.0
        %1887 = vmatprep.subr.mxu0 0.0
        %1888 = vmatpush1.msra.mxu0 0.0
        %1889 = vmatprep.subr.mxu0 0.0
        %1890 = vmatpush1.msra.mxu0 0.0
        %1891 = vmatprep.subr.mxu0 0.0
        %1892 = vmatpush1.msra.mxu0 0.0
        %1893 = vmatprep.subr.mxu0 0.0
        %1894 = vmatpush1.msra.mxu0 0.0
        %1895 = vmatprep.subr.mxu0 0.0
        %1896 = vmatpush1.msra.mxu0 0.0
        %1897 = vmatprep.subr.mxu0 0.0
        %1898 = vmatpush1.msra.mxu0 0.0
        %1899 = vmatprep.subr.mxu0 0.0
        %1900 = vmatpush1.msra.mxu0 0.0
        %1901 = vmatprep.subr.mxu0 0.0
        %1902 = vmatpush1.msra.mxu0 0.0
        %1903 = vmatprep.subr.mxu0 0.0
        %1904 = vmatpush1.msra.mxu0 %v304
        %1905 = vmatprep.subr.mxu0 0.0
        %1906 = vmatpush1.msra.mxu0 %v303
        %1907 = vmatprep.subr.mxu0 0.0
        %1908 = vmatpush1.msra.mxu0 %v302
        %1909 = vmatprep.subr.mxu0 0.0
        %1910 = vmatpush1.msra.mxu0 %v301
        %1911 = vmatprep.subr.mxu0 0.0
        %1912 = vmatpush2.msra.mxu0 0.0
        %1913 = vmatprep.subr.mxu0 0.0
        %1914 = vmatpush2.msra.mxu0 0.0
        %1915 = vmatprep.subr.mxu0 0.0
        %1916 = vmatpush2.msra.mxu0 0.0
        %1917 = vmatprep.subr.mxu0 0.0
        %1918 = vmatpush2.msra.mxu0 0.0
        %1919 = vmatprep.subr.mxu0 0.0
        %1920 = vmatpush2.msra.mxu0 0.0
        %1921 = vmatprep.subr.mxu0 0.0
        %1922 = vmatpush2.msra.mxu0 0.0
        %1923 = vmatprep.subr.mxu0 0.0
        %1924 = vmatpush2.msra.mxu0 0.0
        %1925 = vmatprep.subr.mxu0 0.0
        %1926 = vmatpush2.msra.mxu0 0.0
        %1927 = vmatprep.subr.mxu0 0.0
        %1928 = vmatpush2.msra.mxu0 0.0
        %1929 = vmatprep.subr.mxu0 0.0
        %1930 = vmatpush2.msra.mxu0 0.0
        %1931 = vmatprep.subr.mxu0 0.0
        %1932 = vmatpush2.msra.mxu0 0.0
        %1933 = vmatprep.subr.mxu0 0.0
        %1934 = vmatpush2.msra.mxu0 0.0
        %1935 = vmatprep.subr.mxu0 0.0
        %1936 = vmatpush2.msra.mxu0 0.0
        %1937 = vmatprep.subr.mxu0 0.0
        %1938 = vmatpush2.msra.mxu0 0.0
        %1939 = vmatprep.subr.mxu0 0.0
        %1940 = vmatpush2.msra.mxu0 0.0
        %1941 = vmatprep.subr.mxu0 0.0
        %1942 = vmatpush2.msra.mxu0 0.0
        %1943 = vmatprep.mubr.f32.mxu0 0.0
        %1944 = vmatmul.mubr.f32.gmra.mxu0 %v1877
        %v1945 = vpop.f32.mrf.mxu0
        %v1946 = vadd.f32 0.0, %v1945
        %v1947 = vpop.f32.mrf.mxu0
        %1948 = vdwg.mxu0
        %v1949 = vadd.f32 %v622, %v1946
        %v1951 = vsel %vm470, %v1803, 0
        %1953 = vmatprep.subr.mxu0 0.0
        %1954 = vmatpush1.msra.mxu0 0.0
        %1955 = vmatprep.subr.mxu0 0.0
        %1956 = vmatpush1.msra.mxu0 0.0
        %1957 = vmatprep.subr.mxu0 0.0
        %1958 = vmatpush1.msra.mxu0 0.0
        %1959 = vmatprep.subr.mxu0 0.0
        %1960 = vmatpush1.msra.mxu0 0.0
        %1961 = vmatprep.subr.mxu0 0.0
        %1962 = vmatpush1.msra.mxu0 0.0
        %1963 = vmatprep.subr.mxu0 0.0
        %1964 = vmatpush1.msra.mxu0 0.0
        %1965 = vmatprep.subr.mxu0 0.0
        %1966 = vmatpush1.msra.mxu0 0.0
        %1967 = vmatprep.subr.mxu0 0.0
        %1968 = vmatpush1.msra.mxu0 0.0
        %1969 = vmatprep.subr.mxu0 0.0
        %1970 = vmatpush1.msra.mxu0 0.0
        %1971 = vmatprep.subr.mxu0 0.0
        %1972 = vmatpush1.msra.mxu0 0.0
        %1973 = vmatprep.subr.mxu0 0.0
        %1974 = vmatpush1.msra.mxu0 0.0
        %1975 = vmatprep.subr.mxu0 0.0
        %1976 = vmatpush1.msra.mxu0 0.0
        %1977 = vmatprep.subr.mxu0 0.0
        %1978 = vmatpush1.msra.mxu0 %v308
        %1979 = vmatprep.subr.mxu0 0.0
        %1980 = vmatpush1.msra.mxu0 %v307
        %1981 = vmatprep.subr.mxu0 0.0
        %1982 = vmatpush1.msra.mxu0 %v306
        %1983 = vmatprep.subr.mxu0 0.0
        %1984 = vmatpush1.msra.mxu0 %v305
        %1985 = vmatprep.subr.mxu0 0.0
        %1986 = vmatpush2.msra.mxu0 0.0
        %1987 = vmatprep.subr.mxu0 0.0
        %1988 = vmatpush2.msra.mxu0 0.0
        %1989 = vmatprep.subr.mxu0 0.0
        %1990 = vmatpush2.msra.mxu0 0.0
        %1991 = vmatprep.subr.mxu0 0.0
        %1992 = vmatpush2.msra.mxu0 0.0
        %1993 = vmatprep.subr.mxu0 0.0
        %1994 = vmatpush2.msra.mxu0 0.0
        %1995 = vmatprep.subr.mxu0 0.0
        %1996 = vmatpush2.msra.mxu0 0.0
        %1997 = vmatprep.subr.mxu0 0.0
        %1998 = vmatpush2.msra.mxu0 0.0
        %1999 = vmatprep.subr.mxu0 0.0
        %2000 = vmatpush2.msra.mxu0 0.0
        %2001 = vmatprep.subr.mxu0 0.0
        %2002 = vmatpush2.msra.mxu0 0.0
        %2003 = vmatprep.subr.mxu0 0.0
        %2004 = vmatpush2.msra.mxu0 0.0
        %2005 = vmatprep.subr.mxu0 0.0
        %2006 = vmatpush2.msra.mxu0 0.0
        %2007 = vmatprep.subr.mxu0 0.0
        %2008 = vmatpush2.msra.mxu0 0.0
        %2009 = vmatprep.subr.mxu0 0.0
        %2010 = vmatpush2.msra.mxu0 0.0
        %2011 = vmatprep.subr.mxu0 0.0
        %2012 = vmatpush2.msra.mxu0 0.0
        %2013 = vmatprep.subr.mxu0 0.0
        %2014 = vmatpush2.msra.mxu0 0.0
        %2015 = vmatprep.subr.mxu0 0.0
        %2016 = vmatpush2.msra.mxu0 0.0
        %2017 = vmatprep.mubr.f32.mxu0 0.0
        %2018 = vmatmul.mubr.f32.gmra.mxu0 %v1951
        %v2019 = vpop.f32.mrf.mxu0
        %v2020 = vadd.f32 0.0, %v2019
        %v2021 = vpop.f32.mrf.mxu0
        %2022 = vdwg.mxu0
        %v2023 = vadd.f32 %v1949, %v2020
        %v2024 = vtanh.pop %v2023
        %2025 = vmatprep.subr.mxu0 0.0
        %2026 = vmatpush1.msra.mxu0 0.0
        %2027 = vmatprep.subr.mxu0 0.0
        %2028 = vmatpush1.msra.mxu0 0.0
        %2029 = vmatprep.subr.mxu0 0.0
        %2030 = vmatpush1.msra.mxu0 0.0
        %2031 = vmatprep.subr.mxu0 0.0
        %2032 = vmatpush1.msra.mxu0 0.0
        %2033 = vmatprep.subr.mxu0 0.0
        %2034 = vmatpush1.msra.mxu0 0.0
        %2035 = vmatprep.subr.mxu0 0.0
        %2036 = vmatpush1.msra.mxu0 0.0
        %2037 = vmatprep.subr.mxu0 0.0
        %2038 = vmatpush1.msra.mxu0 0.0
        %2039 = vmatprep.subr.mxu0 0.0
        %2040 = vmatpush1.msra.mxu0 0.0
        %2041 = vmatprep.subr.mxu0 0.0
        %2042 = vmatpush1.msra.mxu0 0.0
        %2043 = vmatprep.subr.mxu0 0.0
        %2044 = vmatpush1.msra.mxu0 0.0
        %2045 = vmatprep.subr.mxu0 0.0
        %2046 = vmatpush1.msra.mxu0 0.0
        %2047 = vmatprep.subr.mxu0 0.0
        %2048 = vmatpush1.msra.mxu0 0.0
        %2049 = vmatprep.subr.mxu0 0.0
        %2050 = vmatpush1.msra.mxu0 %v300
        %2051 = vmatprep.subr.mxu0 0.0
        %2052 = vmatpush1.msra.mxu0 %v299
        %2053 = vmatprep.subr.mxu0 0.0
        %2054 = vmatpush1.msra.mxu0 %v298
        %2055 = vmatprep.subr.mxu0 0.0
        %2056 = vmatpush1.msra.mxu0 %v297
        %2057 = vmatprep.subr.mxu0 0.0
        %2058 = vmatpush2.msra.mxu0 0.0
        %2059 = vmatprep.subr.mxu0 0.0
        %2060 = vmatpush2.msra.mxu0 0.0
        %2061 = vmatprep.subr.mxu0 0.0
        %2062 = vmatpush2.msra.mxu0 0.0
        %2063 = vmatprep.subr.mxu0 0.0
        %2064 = vmatpush2.msra.mxu0 0.0
        %2065 = vmatprep.subr.mxu0 0.0
        %2066 = vmatpush2.msra.mxu0 0.0
        %2067 = vmatprep.subr.mxu0 0.0
        %2068 = vmatpush2.msra.mxu0 0.0
        %2069 = vmatprep.subr.mxu0 0.0
        %2070 = vmatpush2.msra.mxu0 0.0
        %2071 = vmatprep.subr.mxu0 0.0
        %2072 = vmatpush2.msra.mxu0 0.0
        %2073 = vmatprep.subr.mxu0 0.0
        %2074 = vmatpush2.msra.mxu0 0.0
        %2075 = vmatprep.subr.mxu0 0.0
        %2076 = vmatpush2.msra.mxu0 0.0
        %2077 = vmatprep.subr.mxu0 0.0
        %2078 = vmatpush2.msra.mxu0 0.0
        %2079 = vmatprep.subr.mxu0 0.0
        %2080 = vmatpush2.msra.mxu0 0.0
        %2081 = vmatprep.subr.mxu0 0.0
        %2082 = vmatpush2.msra.mxu0 0.0
        %2083 = vmatprep.subr.mxu0 0.0
        %2084 = vmatpush2.msra.mxu0 0.0
        %2085 = vmatprep.subr.mxu0 0.0
        %2086 = vmatpush2.msra.mxu0 0.0
        %2087 = vmatprep.subr.mxu0 0.0
        %2088 = vmatpush2.msra.mxu0 0.0
        %2089 = vmatprep.mubr.f32.mxu0 0.0
        %2090 = vmatmul.mubr.f32.gmra.mxu0 %v1877
        %v2091 = vpop.f32.mrf.mxu0
        %v2092 = vadd.f32 0.0, %v2091
        %v2093 = vpop.f32.mrf.mxu0
        %2094 = vdwg.mxu0
        %v2095 = vadd.f32 %v459, %v2092
        %v2096 = vtanh.pop %v2095
        %v2098 = vsel %vm470, %v2096, 0
        %2100 = vmatprep.subr.mxu0 0.0
        %2101 = vmatpush1.msra.mxu0 0.0
        %2102 = vmatprep.subr.mxu0 0.0
        %2103 = vmatpush1.msra.mxu0 0.0
        %2104 = vmatprep.subr.mxu0 0.0
        %2105 = vmatpush1.msra.mxu0 0.0
        %2106 = vmatprep.subr.mxu0 0.0
        %2107 = vmatpush1.msra.mxu0 0.0
        %2108 = vmatprep.subr.mxu0 0.0
        %2109 = vmatpush1.msra.mxu0 0.0
        %2110 = vmatprep.subr.mxu0 0.0
        %2111 = vmatpush1.msra.mxu0 0.0
        %2112 = vmatprep.subr.mxu0 0.0
        %2113 = vmatpush1.msra.mxu0 0.0
        %2114 = vmatprep.subr.mxu0 0.0
        %2115 = vmatpush1.msra.mxu0 0.0
        %2116 = vmatprep.subr.mxu0 0.0
        %2117 = vmatpush1.msra.mxu0 0.0
        %2118 = vmatprep.subr.mxu0 0.0
        %2119 = vmatpush1.msra.mxu0 0.0
        %2120 = vmatprep.subr.mxu0 0.0
        %2121 = vmatpush1.msra.mxu0 0.0
        %2122 = vmatprep.subr.mxu0 0.0
        %2123 = vmatpush1.msra.mxu0 0.0
        %2124 = vmatprep.subr.mxu0 0.0
        %2125 = vmatpush1.msra.mxu0 %v304
        %2126 = vmatprep.subr.mxu0 0.0
        %2127 = vmatpush1.msra.mxu0 %v303
        %2128 = vmatprep.subr.mxu0 0.0
        %2129 = vmatpush1.msra.mxu0 %v302
        %2130 = vmatprep.subr.mxu0 0.0
        %2131 = vmatpush1.msra.mxu0 %v301
        %2132 = vmatprep.subr.mxu0 0.0
        %2133 = vmatpush2.msra.mxu0 0.0
        %2134 = vmatprep.subr.mxu0 0.0
        %2135 = vmatpush2.msra.mxu0 0.0
        %2136 = vmatprep.subr.mxu0 0.0
        %2137 = vmatpush2.msra.mxu0 0.0
        %2138 = vmatprep.subr.mxu0 0.0
        %2139 = vmatpush2.msra.mxu0 0.0
        %2140 = vmatprep.subr.mxu0 0.0
        %2141 = vmatpush2.msra.mxu0 0.0
        %2142 = vmatprep.subr.mxu0 0.0
        %2143 = vmatpush2.msra.mxu0 0.0
        %2144 = vmatprep.subr.mxu0 0.0
        %2145 = vmatpush2.msra.mxu0 0.0
        %2146 = vmatprep.subr.mxu0 0.0
        %2147 = vmatpush2.msra.mxu0 0.0
        %2148 = vmatprep.subr.mxu0 0.0
        %2149 = vmatpush2.msra.mxu0 0.0
        %2150 = vmatprep.subr.mxu0 0.0
        %2151 = vmatpush2.msra.mxu0 0.0
        %2152 = vmatprep.subr.mxu0 0.0
        %2153 = vmatpush2.msra.mxu0 0.0
        %2154 = vmatprep.subr.mxu0 0.0
        %2155 = vmatpush2.msra.mxu0 0.0
        %2156 = vmatprep.subr.mxu0 0.0
        %2157 = vmatpush2.msra.mxu0 0.0
        %2158 = vmatprep.subr.mxu0 0.0
        %2159 = vmatpush2.msra.mxu0 0.0
        %2160 = vmatprep.subr.mxu0 0.0
        %2161 = vmatpush2.msra.mxu0 0.0
        %2162 = vmatprep.subr.mxu0 0.0
        %2163 = vmatpush2.msra.mxu0 0.0
        %2164 = vmatprep.mubr.f32.mxu0 0.0
        %2165 = vmatmul.mubr.f32.gmra.mxu0 %v2098
        %v2166 = vpop.f32.mrf.mxu0
        %v2167 = vadd.f32 0.0, %v2166
        %v2168 = vpop.f32.mrf.mxu0
        %2169 = vdwg.mxu0
        %v2170 = vadd.f32 %v622, %v2167
        %v2172 = vsel %vm470, %v2024, 0
        %2174 = vmatprep.subr.mxu0 0.0
        %2175 = vmatpush1.msra.mxu0 0.0
        %2176 = vmatprep.subr.mxu0 0.0
        %2177 = vmatpush1.msra.mxu0 0.0
        %2178 = vmatprep.subr.mxu0 0.0
        %2179 = vmatpush1.msra.mxu0 0.0
        %2180 = vmatprep.subr.mxu0 0.0
        %2181 = vmatpush1.msra.mxu0 0.0
        %2182 = vmatprep.subr.mxu0 0.0
        %2183 = vmatpush1.msra.mxu0 0.0
        %2184 = vmatprep.subr.mxu0 0.0
        %2185 = vmatpush1.msra.mxu0 0.0
        %2186 = vmatprep.subr.mxu0 0.0
        %2187 = vmatpush1.msra.mxu0 0.0
        %2188 = vmatprep.subr.mxu0 0.0
        %2189 = vmatpush1.msra.mxu0 0.0
        %2190 = vmatprep.subr.mxu0 0.0
        %2191 = vmatpush1.msra.mxu0 0.0
        %2192 = vmatprep.subr.mxu0 0.0
        %2193 = vmatpush1.msra.mxu0 0.0
        %2194 = vmatprep.subr.mxu0 0.0
        %2195 = vmatpush1.msra.mxu0 0.0
        %2196 = vmatprep.subr.mxu0 0.0
        %2197 = vmatpush1.msra.mxu0 0.0
        %2198 = vmatprep.subr.mxu0 0.0
        %2199 = vmatpush1.msra.mxu0 %v308
        %2200 = vmatprep.subr.mxu0 0.0
        %2201 = vmatpush1.msra.mxu0 %v307
        %2202 = vmatprep.subr.mxu0 0.0
        %2203 = vmatpush1.msra.mxu0 %v306
        %2204 = vmatprep.subr.mxu0 0.0
        %2205 = vmatpush1.msra.mxu0 %v305
        %2206 = vmatprep.subr.mxu0 0.0
        %2207 = vmatpush2.msra.mxu0 0.0
        %2208 = vmatprep.subr.mxu0 0.0
        %2209 = vmatpush2.msra.mxu0 0.0
        %2210 = vmatprep.subr.mxu0 0.0
        %2211 = vmatpush2.msra.mxu0 0.0
        %2212 = vmatprep.subr.mxu0 0.0
        %2213 = vmatpush2.msra.mxu0 0.0
        %2214 = vmatprep.subr.mxu0 0.0
        %2215 = vmatpush2.msra.mxu0 0.0
        %2216 = vmatprep.subr.mxu0 0.0
        %2217 = vmatpush2.msra.mxu0 0.0
        %2218 = vmatprep.subr.mxu0 0.0
        %2219 = vmatpush2.msra.mxu0 0.0
        %2220 = vmatprep.subr.mxu0 0.0
        %2221 = vmatpush2.msra.mxu0 0.0
        %2222 = vmatprep.subr.mxu0 0.0
        %2223 = vmatpush2.msra.mxu0 0.0
        %2224 = vmatprep.subr.mxu0 0.0
        %2225 = vmatpush2.msra.mxu0 0.0
        %2226 = vmatprep.subr.mxu0 0.0
        %2227 = vmatpush2.msra.mxu0 0.0
        %2228 = vmatprep.subr.mxu0 0.0
        %2229 = vmatpush2.msra.mxu0 0.0
        %2230 = vmatprep.subr.mxu0 0.0
        %2231 = vmatpush2.msra.mxu0 0.0
        %2232 = vmatprep.subr.mxu0 0.0
        %2233 = vmatpush2.msra.mxu0 0.0
        %2234 = vmatprep.subr.mxu0 0.0
        %2235 = vmatpush2.msra.mxu0 0.0
        %2236 = vmatprep.subr.mxu0 0.0
        %2237 = vmatpush2.msra.mxu0 0.0
        %2238 = vmatprep.mubr.f32.mxu0 0.0
        %2239 = vmatmul.mubr.f32.gmra.mxu0 %v2172
        %v2240 = vpop.f32.mrf.mxu0
        %v2241 = vadd.f32 0.0, %v2240
        %v2242 = vpop.f32.mrf.mxu0
        %2243 = vdwg.mxu0
        %v2244 = vadd.f32 %v2170, %v2241
        %v2245 = vtanh.pop %v2244
        %2246 = vmatprep.subr.mxu0 0.0
        %2247 = vmatpush1.msra.mxu0 0.0
        %2248 = vmatprep.subr.mxu0 0.0
        %2249 = vmatpush1.msra.mxu0 0.0
        %2250 = vmatprep.subr.mxu0 0.0
        %2251 = vmatpush1.msra.mxu0 0.0
        %2252 = vmatprep.subr.mxu0 0.0
        %2253 = vmatpush1.msra.mxu0 0.0
        %2254 = vmatprep.subr.mxu0 0.0
        %2255 = vmatpush1.msra.mxu0 0.0
        %2256 = vmatprep.subr.mxu0 0.0
        %2257 = vmatpush1.msra.mxu0 0.0
        %2258 = vmatprep.subr.mxu0 0.0
        %2259 = vmatpush1.msra.mxu0 0.0
        %2260 = vmatprep.subr.mxu0 0.0
        %2261 = vmatpush1.msra.mxu0 0.0
        %2262 = vmatprep.subr.mxu0 0.0
        %2263 = vmatpush1.msra.mxu0 0.0
        %2264 = vmatprep.subr.mxu0 0.0
        %2265 = vmatpush1.msra.mxu0 0.0
        %2266 = vmatprep.subr.mxu0 0.0
        %2267 = vmatpush1.msra.mxu0 0.0
        %2268 = vmatprep.subr.mxu0 0.0
        %2269 = vmatpush1.msra.mxu0 0.0
        %2270 = vmatprep.subr.mxu0 0.0
        %2271 = vmatpush1.msra.mxu0 %v300
        %2272 = vmatprep.subr.mxu0 0.0
        %2273 = vmatpush1.msra.mxu0 %v299
        %2274 = vmatprep.subr.mxu0 0.0
        %2275 = vmatpush1.msra.mxu0 %v298
        %2276 = vmatprep.subr.mxu0 0.0
        %2277 = vmatpush1.msra.mxu0 %v297
        %2278 = vmatprep.subr.mxu0 0.0
        %2279 = vmatpush2.msra.mxu0 0.0
        %2280 = vmatprep.subr.mxu0 0.0
        %2281 = vmatpush2.msra.mxu0 0.0
        %2282 = vmatprep.subr.mxu0 0.0
        %2283 = vmatpush2.msra.mxu0 0.0
        %2284 = vmatprep.subr.mxu0 0.0
        %2285 = vmatpush2.msra.mxu0 0.0
        %2286 = vmatprep.subr.mxu0 0.0
        %2287 = vmatpush2.msra.mxu0 0.0
        %2288 = vmatprep.subr.mxu0 0.0
        %2289 = vmatpush2.msra.mxu0 0.0
        %2290 = vmatprep.subr.mxu0 0.0
        %2291 = vmatpush2.msra.mxu0 0.0
        %2292 = vmatprep.subr.mxu0 0.0
        %2293 = vmatpush2.msra.mxu0 0.0
        %2294 = vmatprep.subr.mxu0 0.0
        %2295 = vmatpush2.msra.mxu0 0.0
        %2296 = vmatprep.subr.mxu0 0.0
        %2297 = vmatpush2.msra.mxu0 0.0
        %2298 = vmatprep.subr.mxu0 0.0
        %2299 = vmatpush2.msra.mxu0 0.0
        %2300 = vmatprep.subr.mxu0 0.0
        %2301 = vmatpush2.msra.mxu0 0.0
        %2302 = vmatprep.subr.mxu0 0.0
        %2303 = vmatpush2.msra.mxu0 0.0
        %2304 = vmatprep.subr.mxu0 0.0
        %2305 = vmatpush2.msra.mxu0 0.0
        %2306 = vmatprep.subr.mxu0 0.0
        %2307 = vmatpush2.msra.mxu0 0.0
        %2308 = vmatprep.subr.mxu0 0.0
        %2309 = vmatpush2.msra.mxu0 0.0
        %2310 = vmatprep.mubr.f32.mxu0 0.0
        %2311 = vmatmul.mubr.f32.gmra.mxu0 %v2098
        %v2312 = vpop.f32.mrf.mxu0
        %v2313 = vadd.f32 0.0, %v2312
        %v2314 = vpop.f32.mrf.mxu0
        %2315 = vdwg.mxu0
        %v2316 = vadd.f32 %v464, %v2313
        %v2317 = vtanh.pop %v2316
        %v2319 = vsel %vm470, %v2317, 0
        %2321 = vmatprep.subr.mxu0 0.0
        %2322 = vmatpush1.msra.mxu0 0.0
        %2323 = vmatprep.subr.mxu0 0.0
        %2324 = vmatpush1.msra.mxu0 0.0
        %2325 = vmatprep.subr.mxu0 0.0
        %2326 = vmatpush1.msra.mxu0 0.0
        %2327 = vmatprep.subr.mxu0 0.0
        %2328 = vmatpush1.msra.mxu0 0.0
        %2329 = vmatprep.subr.mxu0 0.0
        %2330 = vmatpush1.msra.mxu0 0.0
        %2331 = vmatprep.subr.mxu0 0.0
        %2332 = vmatpush1.msra.mxu0 0.0
        %2333 = vmatprep.subr.mxu0 0.0
        %2334 = vmatpush1.msra.mxu0 0.0
        %2335 = vmatprep.subr.mxu0 0.0
        %2336 = vmatpush1.msra.mxu0 0.0
        %2337 = vmatprep.subr.mxu0 0.0
        %2338 = vmatpush1.msra.mxu0 0.0
        %2339 = vmatprep.subr.mxu0 0.0
        %2340 = vmatpush1.msra.mxu0 0.0
        %2341 = vmatprep.subr.mxu0 0.0
        %2342 = vmatpush1.msra.mxu0 0.0
        %2343 = vmatprep.subr.mxu0 0.0
        %2344 = vmatpush1.msra.mxu0 0.0
        %2345 = vmatprep.subr.mxu0 0.0
        %2346 = vmatpush1.msra.mxu0 %v304
        %2347 = vmatprep.subr.mxu0 0.0
        %2348 = vmatpush1.msra.mxu0 %v303
        %2349 = vmatprep.subr.mxu0 0.0
        %2350 = vmatpush1.msra.mxu0 %v302
        %2351 = vmatprep.subr.mxu0 0.0
        %2352 = vmatpush1.msra.mxu0 %v301
        %2353 = vmatprep.subr.mxu0 0.0
        %2354 = vmatpush2.msra.mxu0 0.0
        %2355 = vmatprep.subr.mxu0 0.0
        %2356 = vmatpush2.msra.mxu0 0.0
        %2357 = vmatprep.subr.mxu0 0.0
        %2358 = vmatpush2.msra.mxu0 0.0
        %2359 = vmatprep.subr.mxu0 0.0
        %2360 = vmatpush2.msra.mxu0 0.0
        %2361 = vmatprep.subr.mxu0 0.0
        %2362 = vmatpush2.msra.mxu0 0.0
        %2363 = vmatprep.subr.mxu0 0.0
        %2364 = vmatpush2.msra.mxu0 0.0
        %2365 = vmatprep.subr.mxu0 0.0
        %2366 = vmatpush2.msra.mxu0 0.0
        %2367 = vmatprep.subr.mxu0 0.0
        %2368 = vmatpush2.msra.mxu0 0.0
        %2369 = vmatprep.subr.mxu0 0.0
        %2370 = vmatpush2.msra.mxu0 0.0
        %2371 = vmatprep.subr.mxu0 0.0
        %2372 = vmatpush2.msra.mxu0 0.0
        %2373 = vmatprep.subr.mxu0 0.0
        %2374 = vmatpush2.msra.mxu0 0.0
        %2375 = vmatprep.subr.mxu0 0.0
        %2376 = vmatpush2.msra.mxu0 0.0
        %2377 = vmatprep.subr.mxu0 0.0
        %2378 = vmatpush2.msra.mxu0 0.0
        %2379 = vmatprep.subr.mxu0 0.0
        %2380 = vmatpush2.msra.mxu0 0.0
        %2381 = vmatprep.subr.mxu0 0.0
        %2382 = vmatpush2.msra.mxu0 0.0
        %2383 = vmatprep.subr.mxu0 0.0
        %2384 = vmatpush2.msra.mxu0 0.0
        %2385 = vmatprep.mubr.f32.mxu0 0.0
        %2386 = vmatmul.mubr.f32.gmra.mxu0 %v2319
        %v2387 = vpop.f32.mrf.mxu0
        %v2388 = vadd.f32 0.0, %v2387
        %v2389 = vpop.f32.mrf.mxu0
        %2390 = vdwg.mxu0
        %v2391 = vadd.f32 %v622, %v2388
        %v2393 = vsel %vm470, %v2245, 0
        %2395 = vmatprep.subr.mxu0 0.0
        %2396 = vmatpush1.msra.mxu0 0.0
        %2397 = vmatprep.subr.mxu0 0.0
        %2398 = vmatpush1.msra.mxu0 0.0
        %2399 = vmatprep.subr.mxu0 0.0
        %2400 = vmatpush1.msra.mxu0 0.0
        %2401 = vmatprep.subr.mxu0 0.0
        %2402 = vmatpush1.msra.mxu0 0.0
        %2403 = vmatprep.subr.mxu0 0.0
        %2404 = vmatpush1.msra.mxu0 0.0
        %2405 = vmatprep.subr.mxu0 0.0
        %2406 = vmatpush1.msra.mxu0 0.0
        %2407 = vmatprep.subr.mxu0 0.0
        %2408 = vmatpush1.msra.mxu0 0.0
        %2409 = vmatprep.subr.mxu0 0.0
        %2410 = vmatpush1.msra.mxu0 0.0
        %2411 = vmatprep.subr.mxu0 0.0
        %2412 = vmatpush1.msra.mxu0 0.0
        %2413 = vmatprep.subr.mxu0 0.0
        %2414 = vmatpush1.msra.mxu0 0.0
        %2415 = vmatprep.subr.mxu0 0.0
        %2416 = vmatpush1.msra.mxu0 0.0
        %2417 = vmatprep.subr.mxu0 0.0
        %2418 = vmatpush1.msra.mxu0 0.0
        %2419 = vmatprep.subr.mxu0 0.0
        %2420 = vmatpush1.msra.mxu0 %v308
        %2421 = vmatprep.subr.mxu0 0.0
        %2422 = vmatpush1.msra.mxu0 %v307
        %2423 = vmatprep.subr.mxu0 0.0
        %2424 = vmatpush1.msra.mxu0 %v306
        %2425 = vmatprep.subr.mxu0 0.0
        %2426 = vmatpush1.msra.mxu0 %v305
        %2427 = vmatprep.subr.mxu0 0.0
        %2428 = vmatpush2.msra.mxu0 0.0
        %2429 = vmatprep.subr.mxu0 0.0
        %2430 = vmatpush2.msra.mxu0 0.0
        %2431 = vmatprep.subr.mxu0 0.0
        %2432 = vmatpush2.msra.mxu0 0.0
        %2433 = vmatprep.subr.mxu0 0.0
        %2434 = vmatpush2.msra.mxu0 0.0
        %2435 = vmatprep.subr.mxu0 0.0
        %2436 = vmatpush2.msra.mxu0 0.0
        %2437 = vmatprep.subr.mxu0 0.0
        %2438 = vmatpush2.msra.mxu0 0.0
        %2439 = vmatprep.subr.mxu0 0.0
        %2440 = vmatpush2.msra.mxu0 0.0
        %2441 = vmatprep.subr.mxu0 0.0
        %2442 = vmatpush2.msra.mxu0 0.0
        %2443 = vmatprep.subr.mxu0 0.0
        %2444 = vmatpush2.msra.mxu0 0.0
        %2445 = vmatprep.subr.mxu0 0.0
        %2446 = vmatpush2.msra.mxu0 0.0
        %2447 = vmatprep.subr.mxu0 0.0
        %2448 = vmatpush2.msra.mxu0 0.0
        %2449 = vmatprep.subr.mxu0 0.0
        %2450 = vmatpush2.msra.mxu0 0.0
        %2451 = vmatprep.subr.mxu0 0.0
        %2452 = vmatpush2.msra.mxu0 0.0
        %2453 = vmatprep.subr.mxu0 0.0
        %2454 = vmatpush2.msra.mxu0 0.0
        %2455 = vmatprep.subr.mxu0 0.0
        %2456 = vmatpush2.msra.mxu0 0.0
        %2457 = vmatprep.subr.mxu0 0.0
        %2458 = vmatpush2.msra.mxu0 0.0
        %2459 = vmatprep.mubr.f32.mxu0 0.0
        %2460 = vmatmul.mubr.f32.gmra.mxu0 %v2393
        %v2461 = vpop.f32.mrf.mxu0
        %v2462 = vadd.f32 0.0, %v2461
        %v2463 = vpop.f32.mrf.mxu0
        %2464 = vdwg.mxu0
        %v2465 = vadd.f32 %v2391, %v2462
        %v2466 = vtanh.pop %v2465
        %v2467 = vlaneseq
        %v2468 = vshrl.u32 %v2467, 7
        %v2469 = vsub.s32 0, %v2468
        %v2470 = vrot.slane %v315, %v2469
        %v2472 = vsel %vm470, %v2466, 0
        %2474 = vmatprep.subr.mxu0 0.0
        %2475 = vmatpush1.msra.mxu0 0.0
        %2476 = vmatprep.subr.mxu0 0.0
        %2477 = vmatpush1.msra.mxu0 0.0
        %2478 = vmatprep.subr.mxu0 0.0
        %2479 = vmatpush1.msra.mxu0 0.0
        %2480 = vmatprep.subr.mxu0 0.0
        %2481 = vmatpush1.msra.mxu0 0.0
        %2482 = vmatprep.subr.mxu0 0.0
        %2483 = vmatpush1.msra.mxu0 0.0
        %2484 = vmatprep.subr.mxu0 0.0
        %2485 = vmatpush1.msra.mxu0 0.0
        %2486 = vmatprep.subr.mxu0 0.0
        %2487 = vmatpush1.msra.mxu0 0.0
        %2488 = vmatprep.subr.mxu0 0.0
        %2489 = vmatpush1.msra.mxu0 0.0
        %2490 = vmatprep.subr.mxu0 0.0
        %2491 = vmatpush1.msra.mxu0 0.0
        %2492 = vmatprep.subr.mxu0 0.0
        %2493 = vmatpush1.msra.mxu0 0.0
        %2494 = vmatprep.subr.mxu0 0.0
        %2495 = vmatpush1.msra.mxu0 0.0
        %2496 = vmatprep.subr.mxu0 0.0
        %2497 = vmatpush1.msra.mxu0 0.0
        %2498 = vmatprep.subr.mxu0 0.0
        %2499 = vmatpush1.msra.mxu0 %v312
        %2500 = vmatprep.subr.mxu0 0.0
        %2501 = vmatpush1.msra.mxu0 %v311
        %2502 = vmatprep.subr.mxu0 0.0
        %2503 = vmatpush1.msra.mxu0 %v310
        %2504 = vmatprep.subr.mxu0 0.0
        %2505 = vmatpush1.msra.mxu0 %v309
        %2506 = vmatprep.subr.mxu0 0.0
        %2507 = vmatpush2.msra.mxu0 0.0
        %2508 = vmatprep.subr.mxu0 0.0
        %2509 = vmatpush2.msra.mxu0 0.0
        %2510 = vmatprep.subr.mxu0 0.0
        %2511 = vmatpush2.msra.mxu0 0.0
        %2512 = vmatprep.subr.mxu0 0.0
        %2513 = vmatpush2.msra.mxu0 0.0
        %2514 = vmatprep.subr.mxu0 0.0
        %2515 = vmatpush2.msra.mxu0 0.0
        %2516 = vmatprep.subr.mxu0 0.0
        %2517 = vmatpush2.msra.mxu0 0.0
        %2518 = vmatprep.subr.mxu0 0.0
        %2519 = vmatpush2.msra.mxu0 0.0
        %2520 = vmatprep.subr.mxu0 0.0
        %2521 = vmatpush2.msra.mxu0 0.0
        %2522 = vmatprep.subr.mxu0 0.0
        %2523 = vmatpush2.msra.mxu0 0.0
        %2524 = vmatprep.subr.mxu0 0.0
        %2525 = vmatpush2.msra.mxu0 0.0
        %2526 = vmatprep.subr.mxu0 0.0
        %2527 = vmatpush2.msra.mxu0 0.0
        %2528 = vmatprep.subr.mxu0 0.0
        %2529 = vmatpush2.msra.mxu0 0.0
        %2530 = vmatprep.subr.mxu0 0.0
        %2531 = vmatpush2.msra.mxu0 0.0
        %2532 = vmatprep.subr.mxu0 0.0
        %2533 = vmatpush2.msra.mxu0 0.0
        %2534 = vmatprep.subr.mxu0 0.0
        %2535 = vmatpush2.msra.mxu0 0.0
        %2536 = vmatprep.subr.mxu0 0.0
        %2537 = vmatpush2.msra.mxu0 0.0
        %2538 = vmatprep.mubr.f32.mxu0 0.0
        %2539 = vmatmul.mubr.f32.gmra.mxu0 %v2472
        %v2540 = vpop.f32.mrf.mxu0
        %v2541 = vadd.f32 %v2470, %v2540
        %v2542 = vpop.f32.mrf.mxu0
        %2543 = vdwg.mxu0
        %v2544 = vsel %vm470, %v2541, -inf
        %2545 = vmax.xlane.f32.xlu0 %v2544
        %v2546 = vpop.xlane.xlu0 %2545
        %v2547 = vsub.f32 %v2541, %v2546
        %v2548 = vmul.f32 %v2547, 1.442695
        %v2549 = vpow.pop %v2548
        %v2550 = vsel %vm470, %v2549, 0.0
        %2551 = vadd.xlane.f32.xlu0 %v2550
        %v2552 = vpop.xlane.xlu0 %2551
        %v2553 = vlog2.pop %v2552
        %v2554 = vmul.f32 %v2553, 0.6931472
        %v2555 = vadd.f32 %v2546, %v2554
        %v2556 = vsub.f32 %v2541, %v2555
        %2557 = vst.msk [vmem:[%s294] sm:$0xff] %vm470, %v2556
        %s2558 = sand.u32 %s98, 1
        %s2559 = scalar_lea.sflag [#allocation5], %s2558
        %s2560 = sand.u32 %s98, 1
        %s2561 = smul.addr %s2560, 8
        %s2562 = scalar_lea.vmem [#allocation4], %s2561
        // Predicated region
        $region109: #{tpu_custom_call.1} parent=99 // pred_check
          %p2563 = pneg %p108
        $region110: #{tpu_custom_call.1} parent=99 // pred_check_branch
          %2565 = sbr.rel (%p2563) target = $region112
        $region111: #{tpu_custom_call.1} parent=99 // pred_region
          %s2567 = ssub.s32 128, 128
          %2568 = vsyncadd %s2559, %s2567
          %s2569 = smul.addr %s17, 128
          %s2570 = scalar_lea.hbm %s3, %s2569
          %s2572 = sshll.u32 %s2562, 4
          %s2573 = int_to_ptr.vmem [resolvable:$true] %s2572
          %2575 = dma.vmem_to_hbm [thread:$0]  %s2573, 128, %s2570, %s2559
        $region112: #{tpu_custom_call.1} parent=99 // pred_fallthru
          _
      $region100: #{tpu_custom_call.1} parent=5 // pred_fallthru
        _
      %p2576 = scmp.le.s32.totalorder 2, %s12
      // Predicated region
      $region113: #{tpu_custom_call.1} parent=5 // pred_check
        %p2577 = pneg %p2576
      $region114: #{tpu_custom_call.1} parent=5 // pred_check_branch
        %2579 = sbr.rel (%p2577) target = $region116
      $region115: #{tpu_custom_call.1} parent=5 // pred_region
        %s2580 = ssub.s32 %s12, 2
        // Predicated region
        $region117: #{tpu_custom_call.1} parent=115 // pred_check
          %p2581 = pneg %p114
        $region118: #{tpu_custom_call.1} parent=115 // pred_check_branch
          %2583 = sbr.rel (%p2581) target = $region120
        $region119: #{tpu_custom_call.1} parent=115 // pred_region
          %s2584 = sand.u32 %s99, 1
          %s2585 = scalar_lea.sflag [#allocation5], %s2584
          %s2586 = sand.u32 %s99, 1
          %s2587 = smul.addr %s2586, 8
          %s2588 = scalar_lea.vmem [#allocation4], %s2587
          %2589 = dma.done %s2585, 128
        $region120: #{tpu_custom_call.1} parent=115 // pred_fallthru
          _
      $region116: #{tpu_custom_call.1} parent=5 // pred_fallthru
        _
    $region6: #{tpu_custom_call.1} parent=1 // loop_footer
      %s16 = sadd.s32 1, %s12
    $region7: #{tpu_custom_call.1} parent=1 // loop_footer_branch
      %11 = sbr.rel target = $region3
    $region8: #{tpu_custom_call.1} parent=1 // loop_exit
      _
    %2590 = vsyncpa [#allocation5], 1
    %s2591 = scalar_lea.sflag [#allocation5], 1
    %2592 = vsyncpa %s2591, 1

</llo_original>
